<compile_context>
chip_gen: v7x
topology: tpu7x:2x2x1
jax: 0.10.0
libtpu: 0.0.40
codegen_flags: <defaults>
</compile_context>

<pallas_src>
import functools

import jax
import jax.numpy as jnp
from jax import lax
from jax.experimental import pallas as pl
from jax.experimental.pallas import tpu as pltpu


def _lstm_chunk_kernel(x_ref, wih_ref, whh_ref, bias_ref, h_out_ref,
                       xw_sc, h_sc, c_sc, *, seq_len, chunk_t, hidden):
    """One (batch-block, time-chunk) grid cell of the LSTM.

    x_ref    : (chunk_t, Bb, E)  param dtype   streamed embedded inputs
    wih_ref  : (E, 4H)           param dtype   input-projection weights (W_ih^T)
    whh_ref  : (H, 4H)           param dtype   recurrent weights (W_hh^T), gate-major lanes
    bias_ref : (1, 4H)           f32           b_ih + b_hh
    h_out_ref: (Bb, H)           f32           final hidden state for this batch block
    xw_sc    : (chunk_t, Bb, 4H) f32 scratch   per-chunk gate pre-activations
    h_sc,c_sc: (Bb, H)           f32 scratch   recurrent state, persists across chunks
    """
    tc = pl.program_id(1)
    n_tc = pl.num_programs(1)
    H = hidden

    @pl.when(tc == 0)
    def _():
        h_sc[...] = jnp.zeros_like(h_sc)
        c_sc[...] = jnp.zeros_like(c_sc)

    # Hoist weight / bias loads out of the loops.
    wih = wih_ref[...]
    whh = whh_ref[...]
    bias = bias_ref[...]                       # (1, 4H) f32, broadcasts over rows
    mxu_dtype = whh.dtype

    unroll = max(1, min(chunk_t, 8))

    # ---- Phase 1: input projection for the whole chunk ---------------------
    # Independent (Bb, E) @ (E, 4H) matmuls with lane-dense 4H outputs; they
    # pipeline densely through the MXU and are off the recurrent critical path.
    def proj(t, carry):
        xw_sc[t] = (jnp.dot(x_ref[t], wih, preferred_element_type=jnp.float32)
                    + bias)
        return carry

    lax.fori_loop(0, chunk_t, proj, 0, unroll=unroll)

    # ---- Phase 2: serial recurrence (static trip count, tail masked) -------
    t0 = tc * chunk_t

    def step(t, carry):
        h, c = carry
        # One fused lane-dense recurrent matmul per step: (Bb, H) @ (H, 4H).
        rec = jnp.dot(h.astype(mxu_dtype), whh,
                      preferred_element_type=jnp.float32)
        gates = xw_sc[t] + rec                  # (Bb, 4H) f32, gate-major lanes
        i = jax.nn.sigmoid(gates[:, 0 * H:1 * H])
        f = jax.nn.sigmoid(gates[:, 1 * H:2 * H])
        g = jnp.tanh(gates[:, 2 * H:3 * H])
        o = jax.nn.sigmoid(gates[:, 3 * H:4 * H])
        c_new = f * c + i * g
        h_new = o * jnp.tanh(c_new)
        # Mask padded tail timesteps (keeps the trip count static).
        valid = ((t0 + t) < seq_len).astype(jnp.float32)
        h = valid * h_new + (1.0 - valid) * h
        c = valid * c_new + (1.0 - valid) * c
        return h, c

    h_f, c_f = lax.fori_loop(0, chunk_t, step, (h_sc[...], c_sc[...]),
                             unroll=unroll)
    h_sc[...] = h_f
    c_sc[...] = c_f

    @pl.when(tc == n_tc - 1)
    def _():
        h_out_ref[...] = h_f.astype(h_out_ref.dtype)


def path_lstm_forward(token_ids, emb_table, w_ih, w_hh, b_ih, b_hh, *,
                      param_dtype=jnp.bfloat16, chunk_t=None, block_b=None,
                      slab_budget_bytes=8 << 20,
                      vmem_limit_bytes=32 * 1024 * 1024):
    """Forward pass equivalent to PathLSTM.forward (h.squeeze() for num_layers==1).

    v7x  : pass block_b = B // 2 (must stay a multiple of 8, i.e. B >= 16) to
           split the independent batch recurrences across the two TensorCores.
    v5e/v6e (128 MiB VMEM): raise slab_budget_bytes to ~16-32 MiB and
           vmem_limit_bytes to ~64-96 MiB so chunk_t grows and the serial
           time-grid overhead shrinks.
    """
    B, T = token_ids.shape
    E = emb_table.shape[1]
    H = w_hh.shape[1]
    f32 = jnp.float32

    if block_b is None:
        block_b = B
    # Guard (review correctness concern): a batch split must keep the f32
    # sublane rule — block must equal the full dim or be a multiple of 8.
    assert B % block_b == 0 and (block_b == B or block_b % 8 == 0), (
        "block_b must divide B and be a multiple of 8 (or equal B)")

    itemsize = jnp.dtype(param_dtype).itemsize
    if chunk_t is None:
        # Budget: 2 double-buffered x slabs + the per-chunk xW f32 scratch.
        per_step = 2 * block_b * E * itemsize + block_b * 4 * H * 4
        chunk_t = max(1, min(T, slab_budget_bytes // max(1, per_step)))
    num_chunks = pl.cdiv(T, chunk_t)
    t_padded = num_chunks * chunk_t

    # ---- glue (XLA): embedding gather, time-major, cast to stream dtype ----
    x = jnp.take(emb_table, token_ids.T, axis=0).astype(param_dtype)  # (T, B, E)
    if t_padded != T:
        x = jnp.pad(x, ((0, t_padded - T), (0, 0), (0, 0)))

    # Fused, pre-transposed weights (gate order i,f,g,o packed along lanes).
    wih_f = w_ih.T.astype(param_dtype)                     # (E, 4H)
    whh_f = w_hh.T.astype(param_dtype)                     # (H, 4H)
    bias = (b_ih + b_hh).astype(f32).reshape(1, 4 * H)     # (1, 4H)

    kernel = functools.partial(_lstm_chunk_kernel,
                               seq_len=T, chunk_t=chunk_t, hidden=H)

    h_final = pl.pallas_call(
        kernel,
        out_shape=jax.ShapeDtypeStruct((B, H), f32),
        grid=(B // block_b, num_chunks),
        in_specs=[
            # Streamed embedded-input slabs (auto double-buffered).
            pl.BlockSpec((chunk_t, block_b, E), lambda b, t: (t, b, 0)),
            # Weights / bias: constant block index -> fetched once, resident.
            pl.BlockSpec((E, 4 * H), lambda b, t: (0, 0)),
            pl.BlockSpec((H, 4 * H), lambda b, t: (0, 0)),
            pl.BlockSpec((1, 4 * H), lambda b, t: (0, 0)),
        ],
        out_specs=pl.BlockSpec((block_b, H), lambda b, t: (b, 0)),
        scratch_shapes=[
            pltpu.VMEM((chunk_t, block_b, 4 * H), f32),   # per-chunk xW
            pltpu.VMEM((block_b, H), f32),                # h state
            pltpu.VMEM((block_b, H), f32),                # c state
        ],
        compiler_params=pltpu.CompilerParams(
            dimension_semantics=("parallel", "arbitrary"),
            vmem_limit_bytes=vmem_limit_bytes,
        ),
    )(x, wih_f, whh_f, bias)

    return h_final  # (B, H) == h.squeeze() for num_layers == 1, B > 1


def path_lstm_reference(token_ids, emb_table, w_ih, w_hh, b_ih, b_hh):
    """Pure-JAX reference (PyTorch LSTM semantics, gate order i,f,g,o, full f32)."""
    x = jnp.take(emb_table, token_ids, axis=0)          # (B, T, E)
    B, T, _ = x.shape
    H = w_hh.shape[1]
    hp = lax.Precision.HIGHEST
    h = jnp.zeros((B, H), jnp.float32)
    c = jnp.zeros((B, H), jnp.float32)
    for t in range(T):
        gates = (jnp.dot(x[:, t, :], w_ih.T, precision=hp)
                 + jnp.dot(h, w_hh.T, precision=hp) + b_ih + b_hh)
        i = jax.nn.sigmoid(gates[:, 0 * H:1 * H])
        f = jax.nn.sigmoid(gates[:, 1 * H:2 * H])
        g = jnp.tanh(gates[:, 2 * H:3 * H])
        o = jax.nn.sigmoid(gates[:, 3 * H:4 * H])
        c = f * c + i * g
        h = o * jnp.tanh(c)
    return h


if __name__ == "__main__":
    # Small shapes consistent with the module's forward: x is (B, T) int ids.
    VOCAB = 50
    E = 32      # embedding_size
    H = 32      # hidden_size
    B = 2       # batch
    T = 8       # sequence length

    key = jax.random.PRNGKey(0)
    k_ids, k_emb, k_wih, k_whh, k_bih, k_bhh = jax.random.split(key, 6)

    token_ids = jax.random.randint(k_ids, (B, T), 0, VOCAB, dtype=jnp.int32)

    # Deterministic init (nn.Embedding ~ N(0,1); LSTM ~ U(-1/sqrt(H), 1/sqrt(H))).
    emb_table = jax.random.normal(k_emb, (VOCAB, E), dtype=jnp.float32)
    bound = 1.0 / (H ** 0.5)
    w_ih = jax.random.uniform(k_wih, (4 * H, E), jnp.float32, -bound, bound)
    w_hh = jax.random.uniform(k_whh, (4 * H, H), jnp.float32, -bound, bound)
    b_ih = jax.random.uniform(k_bih, (4 * H,), jnp.float32, -bound, bound)
    b_hh = jax.random.uniform(k_bhh, (4 * H,), jnp.float32, -bound, bound)

    ref = path_lstm_reference(token_ids, emb_table, w_ih, w_hh, b_ih, b_hh)

    # 1) Default config (bf16 streaming + bf16 MXU weights, auto chunk_t).
    out_def = path_lstm_forward(token_ids, emb_table, w_ih, w_hh, b_ih, b_hh)
    out_def = jax.block_until_ready(out_def)
    assert out_def.shape == (B, H)
    assert jnp.allclose(out_def, ref, atol=3e-2, rtol=3e-2), "default (bf16) mismatch"

    # 2) f32 params: tight semantic check.  chunk_t=3 exercises the streamed
    #    time grid (3 chunks) AND the masked ragged final chunk (8 = 3+3+2).
    out_f32 = path_lstm_forward(token_ids, emb_table, w_ih, w_hh, b_ih, b_hh,
                                param_dtype=jnp.float32, chunk_t=3)
    out_f32 = jax.block_until_ready(out_f32)
    assert out_f32.shape == (B, H)
    assert jnp.allclose(out_f32, ref, atol=2e-4, rtol=2e-4), "f32 mismatch vs reference"

    # 3) bf16 path with an even chunking (8 = 4+4, no tail masking).
    out_bf16 = path_lstm_forward(token_ids, emb_table, w_ih, w_hh, b_ih, b_hh,
                                 param_dtype=jnp.bfloat16, chunk_t=4)
    out_bf16 = jax.block_until_ready(out_bf16)
    assert out_bf16.shape == (B, H)
    assert jnp.allclose(out_bf16, ref, atol=3e-2, rtol=3e-2), "bf16 mismatch vs reference"

    print("KERNEL_OK")
</pallas_src>

<mosaic_0001>
module attributes {stable_mosaic.version = 11 : i64} {
  func.func @_lstm_chunk_kernel(%arg0: i32, %arg1: i32, %arg2: memref<8x2x32xbf16, #tpu.memory_space<vmem>>, %arg3: memref<32x128xbf16, #tpu.memory_space<vmem>>, %arg4: memref<32x128xbf16, #tpu.memory_space<vmem>>, %arg5: memref<1x128xf32, #tpu.memory_space<vmem>>, %arg6: memref<2x32xf32, #tpu.memory_space<vmem>>, %arg7: memref<8x2x128xf32, #tpu.memory_space<vmem>>, %arg8: memref<2x32xf32, #tpu.memory_space<vmem>>, %arg9: memref<2x32xf32, #tpu.memory_space<vmem>>) attributes {dimension_semantics = [#tpu.dimension_semantics<parallel>, #tpu.dimension_semantics<arbitrary>], iteration_bounds = array<i64: 1, 1>, scalar_prefetch = 0 : i64, scratch_operands = 3 : i64, tpu.core_type = #tpu.core_type<tc>, window_params = [{transform_indices = @transform_0, window_bounds = array<i64: 8, 2, 32>}, {pipeline_mode = #tpu.pipeline_mode<synchronous>, transform_indices = @transform_1, window_bounds = array<i64: 32, 128>}, {pipeline_mode = #tpu.pipeline_mode<synchronous>, transform_indices = @transform_2, window_bounds = array<i64: 32, 128>}, {pipeline_mode = #tpu.pipeline_mode<synchronous>, transform_indices = @transform_3, window_bounds = array<i64: 1, 128>}, {transform_indices = @transform_4, window_bounds = array<i64: 2, 32>}]} {
    %c0_i32 = arith.constant 0 : i32
    %0 = arith.cmpi eq, %arg1, %c0_i32 : i32
    %1 = arith.extui %0 : i1 to i32
    %c0_i32_0 = arith.constant 0 : i32
    %2 = arith.cmpi ne, %1, %c0_i32_0 : i32
    scf.if %2 {
      %cst_138 = arith.constant 0.000000e+00 : f32
      %470 = vector.broadcast %cst_138 : f32 to vector<2x32xf32>
      %c0_139 = arith.constant 0 : index
      %c0_140 = arith.constant 0 : index
      %471 = vector.load %arg8[%c0_139, %c0_140] : memref<2x32xf32, #tpu.memory_space<vmem>>, vector<2x32xf32>
      tpu.vector_store %arg8[%c0_139, %c0_140], %470 {strides = array<i32>} : memref<2x32xf32, #tpu.memory_space<vmem>>, vector<2x32xf32>,
      %cst_141 = arith.constant 0.000000e+00 : f32
      %472 = vector.broadcast %cst_141 : f32 to vector<2x32xf32>
      %c0_142 = arith.constant 0 : index
      %c0_143 = arith.constant 0 : index
      %473 = vector.load %arg9[%c0_142, %c0_143] : memref<2x32xf32, #tpu.memory_space<vmem>>, vector<2x32xf32>
      tpu.vector_store %arg9[%c0_142, %c0_143], %472 {strides = array<i32>} : memref<2x32xf32, #tpu.memory_space<vmem>>, vector<2x32xf32>,
    } else {
    }
    %c0 = arith.constant 0 : index
    %c0_1 = arith.constant 0 : index
    %3 = vector.load %arg3[%c0, %c0_1] : memref<32x128xbf16, #tpu.memory_space<vmem>>, vector<32x128xbf16>
    %c0_2 = arith.constant 0 : index
    %c0_3 = arith.constant 0 : index
    %4 = vector.load %arg4[%c0_2, %c0_3] : memref<32x128xbf16, #tpu.memory_space<vmem>>, vector<32x128xbf16>
    %c0_4 = arith.constant 0 : index
    %c0_5 = arith.constant 0 : index
    %5 = vector.load %arg5[%c0_4, %c0_5] : memref<1x128xf32, #tpu.memory_space<vmem>>, vector<1x128xf32>
    %c0_i32_6 = arith.constant 0 : i32
    %6 = arith.index_cast %c0_i32_6 : i32 to index
    %c0_7 = arith.constant 0 : index
    %c0_8 = arith.constant 0 : index
    %7 = vector.load %arg2[%6, %c0_7, %c0_8] : memref<8x2x32xbf16, #tpu.memory_space<vmem>>, vector<1x2x32xbf16>
    %8 = vector.shape_cast %7 : vector<1x2x32xbf16> to vector<2x32xbf16>
    %cst = arith.constant dense<0.000000e+00> : vector<2x128xf32>
    %9 = tpu.matmul %8, %3, %cst {dimension_numbers = #tpu.dot_dimension_numbers<[1], [0], [0], [1], [0, 0, 1, 1], [], []>} : vector<2x32xbf16>, vector<32x128xbf16>, vector<2x128xf32> -> vector<2x128xf32>
    %10 = vector.broadcast %5 : vector<1x128xf32> to vector<2x128xf32>
    %11 = arith.addf %9, %10 : vector<2x128xf32>
    %12 = arith.index_cast %c0_i32_6 : i32 to index
    %c0_9 = arith.constant 0 : index
    %c0_10 = arith.constant 0 : index
    %13 = vector.load %arg7[%12, %c0_9, %c0_10] : memref<8x2x128xf32, #tpu.memory_space<vmem>>, vector<1x2x128xf32>
    %14 = vector.shape_cast %13 : vector<1x2x128xf32> to vector<2x128xf32>
    %15 = vector.shape_cast %11 : vector<2x128xf32> to vector<1x2x128xf32>
    tpu.vector_store %arg7[%12, %c0_9, %c0_10], %15 {strides = array<i32>} : memref<8x2x128xf32, #tpu.memory_space<vmem>>, vector<1x2x128xf32>,
    %c1_i32 = arith.constant 1 : i32
    %16 = arith.index_cast %c1_i32 : i32 to index
    %c0_11 = arith.constant 0 : index
    %c0_12 = arith.constant 0 : index
    %17 = vector.load %arg2[%16, %c0_11, %c0_12] : memref<8x2x32xbf16, #tpu.memory_space<vmem>>, vector<1x2x32xbf16>
    %18 = vector.shape_cast %17 : vector<1x2x32xbf16> to vector<2x32xbf16>
    %cst_13 = arith.constant dense<0.000000e+00> : vector<2x128xf32>
    %19 = tpu.matmul %18, %3, %cst_13 {dimension_numbers = #tpu.dot_dimension_numbers<[1], [0], [0], [1], [0, 0, 1, 1], [], []>} : vector<2x32xbf16>, vector<32x128xbf16>, vector<2x128xf32> -> vector<2x128xf32>
    %20 = vector.broadcast %5 : vector<1x128xf32> to vector<2x128xf32>
    %21 = arith.addf %19, %20 : vector<2x128xf32>
    %22 = arith.index_cast %c1_i32 : i32 to index
    %c0_14 = arith.constant 0 : index
    %c0_15 = arith.constant 0 : index
    %23 = vector.load %arg7[%22, %c0_14, %c0_15] : memref<8x2x128xf32, #tpu.memory_space<vmem>>, vector<1x2x128xf32>
    %24 = vector.shape_cast %23 : vector<1x2x128xf32> to vector<2x128xf32>
    %25 = vector.shape_cast %21 : vector<2x128xf32> to vector<1x2x128xf32>
    tpu.vector_store %arg7[%22, %c0_14, %c0_15], %25 {strides = array<i32>} : memref<8x2x128xf32, #tpu.memory_space<vmem>>, vector<1x2x128xf32>,
    %c2_i32 = arith.constant 2 : i32
    %26 = arith.index_cast %c2_i32 : i32 to index
    %c0_16 = arith.constant 0 : index
    %c0_17 = arith.constant 0 : index
    %27 = vector.load %arg2[%26, %c0_16, %c0_17] : memref<8x2x32xbf16, #tpu.memory_space<vmem>>, vector<1x2x32xbf16>
    %28 = vector.shape_cast %27 : vector<1x2x32xbf16> to vector<2x32xbf16>
    %cst_18 = arith.constant dense<0.000000e+00> : vector<2x128xf32>
    %29 = tpu.matmul %28, %3, %cst_18 {dimension_numbers = #tpu.dot_dimension_numbers<[1], [0], [0], [1], [0, 0, 1, 1], [], []>} : vector<2x32xbf16>, vector<32x128xbf16>, vector<2x128xf32> -> vector<2x128xf32>
    %30 = vector.broadcast %5 : vector<1x128xf32> to vector<2x128xf32>
    %31 = arith.addf %29, %30 : vector<2x128xf32>
    %32 = arith.index_cast %c2_i32 : i32 to index
    %c0_19 = arith.constant 0 : index
    %c0_20 = arith.constant 0 : index
    %33 = vector.load %arg7[%32, %c0_19, %c0_20] : memref<8x2x128xf32, #tpu.memory_space<vmem>>, vector<1x2x128xf32>
    %34 = vector.shape_cast %33 : vector<1x2x128xf32> to vector<2x128xf32>
    %35 = vector.shape_cast %31 : vector<2x128xf32> to vector<1x2x128xf32>
    tpu.vector_store %arg7[%32, %c0_19, %c0_20], %35 {strides = array<i32>} : memref<8x2x128xf32, #tpu.memory_space<vmem>>, vector<1x2x128xf32>,
    %c3_i32 = arith.constant 3 : i32
    %36 = arith.index_cast %c3_i32 : i32 to index
    %c0_21 = arith.constant 0 : index
    %c0_22 = arith.constant 0 : index
    %37 = vector.load %arg2[%36, %c0_21, %c0_22] : memref<8x2x32xbf16, #tpu.memory_space<vmem>>, vector<1x2x32xbf16>
    %38 = vector.shape_cast %37 : vector<1x2x32xbf16> to vector<2x32xbf16>
    %cst_23 = arith.constant dense<0.000000e+00> : vector<2x128xf32>
    %39 = tpu.matmul %38, %3, %cst_23 {dimension_numbers = #tpu.dot_dimension_numbers<[1], [0], [0], [1], [0, 0, 1, 1], [], []>} : vector<2x32xbf16>, vector<32x128xbf16>, vector<2x128xf32> -> vector<2x128xf32>
    %40 = vector.broadcast %5 : vector<1x128xf32> to vector<2x128xf32>
    %41 = arith.addf %39, %40 : vector<2x128xf32>
    %42 = arith.index_cast %c3_i32 : i32 to index
    %c0_24 = arith.constant 0 : index
    %c0_25 = arith.constant 0 : index
    %43 = vector.load %arg7[%42, %c0_24, %c0_25] : memref<8x2x128xf32, #tpu.memory_space<vmem>>, vector<1x2x128xf32>
    %44 = vector.shape_cast %43 : vector<1x2x128xf32> to vector<2x128xf32>
    %45 = vector.shape_cast %41 : vector<2x128xf32> to vector<1x2x128xf32>
    tpu.vector_store %arg7[%42, %c0_24, %c0_25], %45 {strides = array<i32>} : memref<8x2x128xf32, #tpu.memory_space<vmem>>, vector<1x2x128xf32>,
    %c4_i32 = arith.constant 4 : i32
    %46 = arith.index_cast %c4_i32 : i32 to index
    %c0_26 = arith.constant 0 : index
    %c0_27 = arith.constant 0 : index
    %47 = vector.load %arg2[%46, %c0_26, %c0_27] : memref<8x2x32xbf16, #tpu.memory_space<vmem>>, vector<1x2x32xbf16>
    %48 = vector.shape_cast %47 : vector<1x2x32xbf16> to vector<2x32xbf16>
    %cst_28 = arith.constant dense<0.000000e+00> : vector<2x128xf32>
    %49 = tpu.matmul %48, %3, %cst_28 {dimension_numbers = #tpu.dot_dimension_numbers<[1], [0], [0], [1], [0, 0, 1, 1], [], []>} : vector<2x32xbf16>, vector<32x128xbf16>, vector<2x128xf32> -> vector<2x128xf32>
    %50 = vector.broadcast %5 : vector<1x128xf32> to vector<2x128xf32>
    %51 = arith.addf %49, %50 : vector<2x128xf32>
    %52 = arith.index_cast %c4_i32 : i32 to index
    %c0_29 = arith.constant 0 : index
    %c0_30 = arith.constant 0 : index
    %53 = vector.load %arg7[%52, %c0_29, %c0_30] : memref<8x2x128xf32, #tpu.memory_space<vmem>>, vector<1x2x128xf32>
    %54 = vector.shape_cast %53 : vector<1x2x128xf32> to vector<2x128xf32>
    %55 = vector.shape_cast %51 : vector<2x128xf32> to vector<1x2x128xf32>
    tpu.vector_store %arg7[%52, %c0_29, %c0_30], %55 {strides = array<i32>} : memref<8x2x128xf32, #tpu.memory_space<vmem>>, vector<1x2x128xf32>,
    %c5_i32 = arith.constant 5 : i32
    %56 = arith.index_cast %c5_i32 : i32 to index
    %c0_31 = arith.constant 0 : index
    %c0_32 = arith.constant 0 : index
    %57 = vector.load %arg2[%56, %c0_31, %c0_32] : memref<8x2x32xbf16, #tpu.memory_space<vmem>>, vector<1x2x32xbf16>
    %58 = vector.shape_cast %57 : vector<1x2x32xbf16> to vector<2x32xbf16>
    %cst_33 = arith.constant dense<0.000000e+00> : vector<2x128xf32>
    %59 = tpu.matmul %58, %3, %cst_33 {dimension_numbers = #tpu.dot_dimension_numbers<[1], [0], [0], [1], [0, 0, 1, 1], [], []>} : vector<2x32xbf16>, vector<32x128xbf16>, vector<2x128xf32> -> vector<2x128xf32>
    %60 = vector.broadcast %5 : vector<1x128xf32> to vector<2x128xf32>
    %61 = arith.addf %59, %60 : vector<2x128xf32>
    %62 = arith.index_cast %c5_i32 : i32 to index
    %c0_34 = arith.constant 0 : index
    %c0_35 = arith.constant 0 : index
    %63 = vector.load %arg7[%62, %c0_34, %c0_35] : memref<8x2x128xf32, #tpu.memory_space<vmem>>, vector<1x2x128xf32>
    %64 = vector.shape_cast %63 : vector<1x2x128xf32> to vector<2x128xf32>
    %65 = vector.shape_cast %61 : vector<2x128xf32> to vector<1x2x128xf32>
    tpu.vector_store %arg7[%62, %c0_34, %c0_35], %65 {strides = array<i32>} : memref<8x2x128xf32, #tpu.memory_space<vmem>>, vector<1x2x128xf32>,
    %c6_i32 = arith.constant 6 : i32
    %66 = arith.index_cast %c6_i32 : i32 to index
    %c0_36 = arith.constant 0 : index
    %c0_37 = arith.constant 0 : index
    %67 = vector.load %arg2[%66, %c0_36, %c0_37] : memref<8x2x32xbf16, #tpu.memory_space<vmem>>, vector<1x2x32xbf16>
    %68 = vector.shape_cast %67 : vector<1x2x32xbf16> to vector<2x32xbf16>
    %cst_38 = arith.constant dense<0.000000e+00> : vector<2x128xf32>
    %69 = tpu.matmul %68, %3, %cst_38 {dimension_numbers = #tpu.dot_dimension_numbers<[1], [0], [0], [1], [0, 0, 1, 1], [], []>} : vector<2x32xbf16>, vector<32x128xbf16>, vector<2x128xf32> -> vector<2x128xf32>
    %70 = vector.broadcast %5 : vector<1x128xf32> to vector<2x128xf32>
    %71 = arith.addf %69, %70 : vector<2x128xf32>
    %72 = arith.index_cast %c6_i32 : i32 to index
    %c0_39 = arith.constant 0 : index
    %c0_40 = arith.constant 0 : index
    %73 = vector.load %arg7[%72, %c0_39, %c0_40] : memref<8x2x128xf32, #tpu.memory_space<vmem>>, vector<1x2x128xf32>
    %74 = vector.shape_cast %73 : vector<1x2x128xf32> to vector<2x128xf32>
    %75 = vector.shape_cast %71 : vector<2x128xf32> to vector<1x2x128xf32>
    tpu.vector_store %arg7[%72, %c0_39, %c0_40], %75 {strides = array<i32>} : memref<8x2x128xf32, #tpu.memory_space<vmem>>, vector<1x2x128xf32>,
    %c7_i32 = arith.constant 7 : i32
    %76 = arith.index_cast %c7_i32 : i32 to index
    %c0_41 = arith.constant 0 : index
    %c0_42 = arith.constant 0 : index
    %77 = vector.load %arg2[%76, %c0_41, %c0_42] : memref<8x2x32xbf16, #tpu.memory_space<vmem>>, vector<1x2x32xbf16>
    %78 = vector.shape_cast %77 : vector<1x2x32xbf16> to vector<2x32xbf16>
    %cst_43 = arith.constant dense<0.000000e+00> : vector<2x128xf32>
    %79 = tpu.matmul %78, %3, %cst_43 {dimension_numbers = #tpu.dot_dimension_numbers<[1], [0], [0], [1], [0, 0, 1, 1], [], []>} : vector<2x32xbf16>, vector<32x128xbf16>, vector<2x128xf32> -> vector<2x128xf32>
    %80 = vector.broadcast %5 : vector<1x128xf32> to vector<2x128xf32>
    %81 = arith.addf %79, %80 : vector<2x128xf32>
    %82 = arith.index_cast %c7_i32 : i32 to index
    %c0_44 = arith.constant 0 : index
    %c0_45 = arith.constant 0 : index
    %83 = vector.load %arg7[%82, %c0_44, %c0_45] : memref<8x2x128xf32, #tpu.memory_space<vmem>>, vector<1x2x128xf32>
    %84 = vector.shape_cast %83 : vector<1x2x128xf32> to vector<2x128xf32>
    %85 = vector.shape_cast %81 : vector<2x128xf32> to vector<1x2x128xf32>
    tpu.vector_store %arg7[%82, %c0_44, %c0_45], %85 {strides = array<i32>} : memref<8x2x128xf32, #tpu.memory_space<vmem>>, vector<1x2x128xf32>,
    %c8_i32 = arith.constant 8 : i32
    %c8_i32_46 = arith.constant 8 : i32
    %86 = arith.muli %arg1, %c8_i32_46 : i32
    %c0_47 = arith.constant 0 : index
    %c0_48 = arith.constant 0 : index
    %87 = vector.load %arg8[%c0_47, %c0_48] : memref<2x32xf32, #tpu.memory_space<vmem>>, vector<2x32xf32>
    %c0_49 = arith.constant 0 : index
    %c0_50 = arith.constant 0 : index
    %88 = vector.load %arg9[%c0_49, %c0_50] : memref<2x32xf32, #tpu.memory_space<vmem>>, vector<2x32xf32>
    %c0_i32_51 = arith.constant 0 : i32
    %89 = arith.truncf %87 : vector<2x32xf32> to vector<2x32xbf16>
    %cst_52 = arith.constant dense<0.000000e+00> : vector<2x128xf32>
    %90 = tpu.matmul %89, %4, %cst_52 {dimension_numbers = #tpu.dot_dimension_numbers<[1], [0], [0], [1], [0, 0, 1, 1], [], []>} : vector<2x32xbf16>, vector<32x128xbf16>, vector<2x128xf32> -> vector<2x128xf32>
    %91 = arith.index_cast %c0_i32_51 : i32 to index
    %c0_53 = arith.constant 0 : index
    %c0_54 = arith.constant 0 : index
    %92 = vector.load %arg7[%91, %c0_53, %c0_54] : memref<8x2x128xf32, #tpu.memory_space<vmem>>, vector<1x2x128xf32>
    %93 = vector.shape_cast %92 : vector<1x2x128xf32> to vector<2x128xf32>
    %94 = arith.addf %93, %90 : vector<2x128xf32>
    %95 = vector.extract_strided_slice %94 {offsets = [0, 0], sizes = [2, 32], strides = [1, 1]} : vector<2x128xf32> to vector<2x32xf32>
    %96 = arith.negf %95 : vector<2x32xf32>
    %97 = math.exp %96 : vector<2x32xf32>
    %cst_55 = arith.constant 1.000000e+00 : f32
    %98 = vector.broadcast %cst_55 : f32 to vector<2x32xf32>
    %99 = arith.addf %98, %97 : vector<2x32xf32>
    %100 = arith.divf %98, %99 : vector<2x32xf32>
    %101 = vector.extract_strided_slice %94 {offsets = [0, 32], sizes = [2, 32], strides = [1, 1]} : vector<2x128xf32> to vector<2x32xf32>
    %102 = arith.negf %101 : vector<2x32xf32>
    %103 = math.exp %102 : vector<2x32xf32>
    %cst_56 = arith.constant 1.000000e+00 : f32
    %104 = vector.broadcast %cst_56 : f32 to vector<2x32xf32>
    %105 = arith.addf %104, %103 : vector<2x32xf32>
    %106 = arith.divf %104, %105 : vector<2x32xf32>
    %107 = vector.extract_strided_slice %94 {offsets = [0, 64], sizes = [2, 32], strides = [1, 1]} : vector<2x128xf32> to vector<2x32xf32>
    %108 = math.tanh %107 : vector<2x32xf32>
    %109 = vector.extract_strided_slice %94 {offsets = [0, 96], sizes = [2, 32], strides = [1, 1]} : vector<2x128xf32> to vector<2x32xf32>
    %110 = arith.negf %109 : vector<2x32xf32>
    %111 = math.exp %110 : vector<2x32xf32>
    %cst_57 = arith.constant 1.000000e+00 : f32
    %112 = vector.broadcast %cst_57 : f32 to vector<2x32xf32>
    %113 = arith.addf %112, %111 : vector<2x32xf32>
    %114 = arith.divf %112, %113 : vector<2x32xf32>
    %115 = arith.mulf %106, %88 : vector<2x32xf32>
    %116 = arith.mulf %100, %108 : vector<2x32xf32>
    %117 = arith.addf %115, %116 : vector<2x32xf32>
    %118 = math.tanh %117 : vector<2x32xf32>
    %119 = arith.mulf %114, %118 : vector<2x32xf32>
    %120 = arith.addi %86, %c0_i32_51 : i32
    %c8_i32_58 = arith.constant 8 : i32
    %121 = arith.cmpi slt, %120, %c8_i32_58 : i32
    %122 = arith.extui %121 : i1 to i32
    %123 = arith.sitofp %122 : i32 to f32
    %124 = vector.broadcast %123 : f32 to vector<2x32xf32>
    %125 = arith.mulf %124, %119 : vector<2x32xf32>
    %cst_59 = arith.constant 1.000000e+00 : f32
    %126 = arith.subf %cst_59, %123 : f32
    %127 = vector.broadcast %126 : f32 to vector<2x32xf32>
    %128 = arith.mulf %127, %87 : vector<2x32xf32>
    %129 = arith.addf %125, %128 : vector<2x32xf32>
    %130 = vector.broadcast %123 : f32 to vector<2x32xf32>
    %131 = arith.mulf %130, %117 : vector<2x32xf32>
    %cst_60 = arith.constant 1.000000e+00 : f32
    %132 = arith.subf %cst_60, %123 : f32
    %133 = vector.broadcast %132 : f32 to vector<2x32xf32>
    %134 = arith.mulf %133, %88 : vector<2x32xf32>
    %135 = arith.addf %131, %134 : vector<2x32xf32>
    %c1_i32_61 = arith.constant 1 : i32
    %136 = arith.truncf %129 : vector<2x32xf32> to vector<2x32xbf16>
    %cst_62 = arith.constant dense<0.000000e+00> : vector<2x128xf32>
    %137 = tpu.matmul %136, %4, %cst_62 {dimension_numbers = #tpu.dot_dimension_numbers<[1], [0], [0], [1], [0, 0, 1, 1], [], []>} : vector<2x32xbf16>, vector<32x128xbf16>, vector<2x128xf32> -> vector<2x128xf32>
    %138 = arith.index_cast %c1_i32_61 : i32 to index
    %c0_63 = arith.constant 0 : index
    %c0_64 = arith.constant 0 : index
    %139 = vector.load %arg7[%138, %c0_63, %c0_64] : memref<8x2x128xf32, #tpu.memory_space<vmem>>, vector<1x2x128xf32>
    %140 = vector.shape_cast %139 : vector<1x2x128xf32> to vector<2x128xf32>
    %141 = arith.addf %140, %137 : vector<2x128xf32>
    %142 = vector.extract_strided_slice %141 {offsets = [0, 0], sizes = [2, 32], strides = [1, 1]} : vector<2x128xf32> to vector<2x32xf32>
    %143 = arith.negf %142 : vector<2x32xf32>
    %144 = math.exp %143 : vector<2x32xf32>
    %cst_65 = arith.constant 1.000000e+00 : f32
    %145 = vector.broadcast %cst_65 : f32 to vector<2x32xf32>
    %146 = arith.addf %145, %144 : vector<2x32xf32>
    %147 = arith.divf %145, %146 : vector<2x32xf32>
    %148 = vector.extract_strided_slice %141 {offsets = [0, 32], sizes = [2, 32], strides = [1, 1]} : vector<2x128xf32> to vector<2x32xf32>
    %149 = arith.negf %148 : vector<2x32xf32>
    %150 = math.exp %149 : vector<2x32xf32>
    %cst_66 = arith.constant 1.000000e+00 : f32
    %151 = vector.broadcast %cst_66 : f32 to vector<2x32xf32>
    %152 = arith.addf %151, %150 : vector<2x32xf32>
    %153 = arith.divf %151, %152 : vector<2x32xf32>
    %154 = vector.extract_strided_slice %141 {offsets = [0, 64], sizes = [2, 32], strides = [1, 1]} : vector<2x128xf32> to vector<2x32xf32>
    %155 = math.tanh %154 : vector<2x32xf32>
    %156 = vector.extract_strided_slice %141 {offsets = [0, 96], sizes = [2, 32], strides = [1, 1]} : vector<2x128xf32> to vector<2x32xf32>
    %157 = arith.negf %156 : vector<2x32xf32>
    %158 = math.exp %157 : vector<2x32xf32>
    %cst_67 = arith.constant 1.000000e+00 : f32
    %159 = vector.broadcast %cst_67 : f32 to vector<2x32xf32>
    %160 = arith.addf %159, %158 : vector<2x32xf32>
    %161 = arith.divf %159, %160 : vector<2x32xf32>
    %162 = arith.mulf %153, %135 : vector<2x32xf32>
    %163 = arith.mulf %147, %155 : vector<2x32xf32>
    %164 = arith.addf %162, %163 : vector<2x32xf32>
    %165 = math.tanh %164 : vector<2x32xf32>
    %166 = arith.mulf %161, %165 : vector<2x32xf32>
    %167 = arith.addi %86, %c1_i32_61 : i32
    %c8_i32_68 = arith.constant 8 : i32
    %168 = arith.cmpi slt, %167, %c8_i32_68 : i32
    %169 = arith.extui %168 : i1 to i32
    %170 = arith.sitofp %169 : i32 to f32
    %171 = vector.broadcast %170 : f32 to vector<2x32xf32>
    %172 = arith.mulf %171, %166 : vector<2x32xf32>
    %cst_69 = arith.constant 1.000000e+00 : f32
    %173 = arith.subf %cst_69, %170 : f32
    %174 = vector.broadcast %173 : f32 to vector<2x32xf32>
    %175 = arith.mulf %174, %129 : vector<2x32xf32>
    %176 = arith.addf %172, %175 : vector<2x32xf32>
    %177 = vector.broadcast %170 : f32 to vector<2x32xf32>
    %178 = arith.mulf %177, %164 : vector<2x32xf32>
    %cst_70 = arith.constant 1.000000e+00 : f32
    %179 = arith.subf %cst_70, %170 : f32
    %180 = vector.broadcast %179 : f32 to vector<2x32xf32>
    %181 = arith.mulf %180, %135 : vector<2x32xf32>
    %182 = arith.addf %178, %181 : vector<2x32xf32>
    %c2_i32_71 = arith.constant 2 : i32
    %183 = arith.truncf %176 : vector<2x32xf32> to vector<2x32xbf16>
    %cst_72 = arith.constant dense<0.000000e+00> : vector<2x128xf32>
    %184 = tpu.matmul %183, %4, %cst_72 {dimension_numbers = #tpu.dot_dimension_numbers<[1], [0], [0], [1], [0, 0, 1, 1], [], []>} : vector<2x32xbf16>, vector<32x128xbf16>, vector<2x128xf32> -> vector<2x128xf32>
    %185 = arith.index_cast %c2_i32_71 : i32 to index
    %c0_73 = arith.constant 0 : index
    %c0_74 = arith.constant 0 : index
    %186 = vector.load %arg7[%185, %c0_73, %c0_74] : memref<8x2x128xf32, #tpu.memory_space<vmem>>, vector<1x2x128xf32>
    %187 = vector.shape_cast %186 : vector<1x2x128xf32> to vector<2x128xf32>
    %188 = arith.addf %187, %184 : vector<2x128xf32>
    %189 = vector.extract_strided_slice %188 {offsets = [0, 0], sizes = [2, 32], strides = [1, 1]} : vector<2x128xf32> to vector<2x32xf32>
    %190 = arith.negf %189 : vector<2x32xf32>
    %191 = math.exp %190 : vector<2x32xf32>
    %cst_75 = arith.constant 1.000000e+00 : f32
    %192 = vector.broadcast %cst_75 : f32 to vector<2x32xf32>
    %193 = arith.addf %192, %191 : vector<2x32xf32>
    %194 = arith.divf %192, %193 : vector<2x32xf32>
    %195 = vector.extract_strided_slice %188 {offsets = [0, 32], sizes = [2, 32], strides = [1, 1]} : vector<2x128xf32> to vector<2x32xf32>
    %196 = arith.negf %195 : vector<2x32xf32>
    %197 = math.exp %196 : vector<2x32xf32>
    %cst_76 = arith.constant 1.000000e+00 : f32
    %198 = vector.broadcast %cst_76 : f32 to vector<2x32xf32>
    %199 = arith.addf %198, %197 : vector<2x32xf32>
    %200 = arith.divf %198, %199 : vector<2x32xf32>
    %201 = vector.extract_strided_slice %188 {offsets = [0, 64], sizes = [2, 32], strides = [1, 1]} : vector<2x128xf32> to vector<2x32xf32>
    %202 = math.tanh %201 : vector<2x32xf32>
    %203 = vector.extract_strided_slice %188 {offsets = [0, 96], sizes = [2, 32], strides = [1, 1]} : vector<2x128xf32> to vector<2x32xf32>
    %204 = arith.negf %203 : vector<2x32xf32>
    %205 = math.exp %204 : vector<2x32xf32>
    %cst_77 = arith.constant 1.000000e+00 : f32
    %206 = vector.broadcast %cst_77 : f32 to vector<2x32xf32>
    %207 = arith.addf %206, %205 : vector<2x32xf32>
    %208 = arith.divf %206, %207 : vector<2x32xf32>
    %209 = arith.mulf %200, %182 : vector<2x32xf32>
    %210 = arith.mulf %194, %202 : vector<2x32xf32>
    %211 = arith.addf %209, %210 : vector<2x32xf32>
    %212 = math.tanh %211 : vector<2x32xf32>
    %213 = arith.mulf %208, %212 : vector<2x32xf32>
    %214 = arith.addi %86, %c2_i32_71 : i32
    %c8_i32_78 = arith.constant 8 : i32
    %215 = arith.cmpi slt, %214, %c8_i32_78 : i32
    %216 = arith.extui %215 : i1 to i32
    %217 = arith.sitofp %216 : i32 to f32
    %218 = vector.broadcast %217 : f32 to vector<2x32xf32>
    %219 = arith.mulf %218, %213 : vector<2x32xf32>
    %cst_79 = arith.constant 1.000000e+00 : f32
    %220 = arith.subf %cst_79, %217 : f32
    %221 = vector.broadcast %220 : f32 to vector<2x32xf32>
    %222 = arith.mulf %221, %176 : vector<2x32xf32>
    %223 = arith.addf %219, %222 : vector<2x32xf32>
    %224 = vector.broadcast %217 : f32 to vector<2x32xf32>
    %225 = arith.mulf %224, %211 : vector<2x32xf32>
    %cst_80 = arith.constant 1.000000e+00 : f32
    %226 = arith.subf %cst_80, %217 : f32
    %227 = vector.broadcast %226 : f32 to vector<2x32xf32>
    %228 = arith.mulf %227, %182 : vector<2x32xf32>
    %229 = arith.addf %225, %228 : vector<2x32xf32>
    %c3_i32_81 = arith.constant 3 : i32
    %230 = arith.truncf %223 : vector<2x32xf32> to vector<2x32xbf16>
    %cst_82 = arith.constant dense<0.000000e+00> : vector<2x128xf32>
    %231 = tpu.matmul %230, %4, %cst_82 {dimension_numbers = #tpu.dot_dimension_numbers<[1], [0], [0], [1], [0, 0, 1, 1], [], []>} : vector<2x32xbf16>, vector<32x128xbf16>, vector<2x128xf32> -> vector<2x128xf32>
    %232 = arith.index_cast %c3_i32_81 : i32 to index
    %c0_83 = arith.constant 0 : index
    %c0_84 = arith.constant 0 : index
    %233 = vector.load %arg7[%232, %c0_83, %c0_84] : memref<8x2x128xf32, #tpu.memory_space<vmem>>, vector<1x2x128xf32>
    %234 = vector.shape_cast %233 : vector<1x2x128xf32> to vector<2x128xf32>
    %235 = arith.addf %234, %231 : vector<2x128xf32>
    %236 = vector.extract_strided_slice %235 {offsets = [0, 0], sizes = [2, 32], strides = [1, 1]} : vector<2x128xf32> to vector<2x32xf32>
    %237 = arith.negf %236 : vector<2x32xf32>
    %238 = math.exp %237 : vector<2x32xf32>
    %cst_85 = arith.constant 1.000000e+00 : f32
    %239 = vector.broadcast %cst_85 : f32 to vector<2x32xf32>
    %240 = arith.addf %239, %238 : vector<2x32xf32>
    %241 = arith.divf %239, %240 : vector<2x32xf32>
    %242 = vector.extract_strided_slice %235 {offsets = [0, 32], sizes = [2, 32], strides = [1, 1]} : vector<2x128xf32> to vector<2x32xf32>
    %243 = arith.negf %242 : vector<2x32xf32>
    %244 = math.exp %243 : vector<2x32xf32>
    %cst_86 = arith.constant 1.000000e+00 : f32
    %245 = vector.broadcast %cst_86 : f32 to vector<2x32xf32>
    %246 = arith.addf %245, %244 : vector<2x32xf32>
    %247 = arith.divf %245, %246 : vector<2x32xf32>
    %248 = vector.extract_strided_slice %235 {offsets = [0, 64], sizes = [2, 32], strides = [1, 1]} : vector<2x128xf32> to vector<2x32xf32>
    %249 = math.tanh %248 : vector<2x32xf32>
    %250 = vector.extract_strided_slice %235 {offsets = [0, 96], sizes = [2, 32], strides = [1, 1]} : vector<2x128xf32> to vector<2x32xf32>
    %251 = arith.negf %250 : vector<2x32xf32>
    %252 = math.exp %251 : vector<2x32xf32>
    %cst_87 = arith.constant 1.000000e+00 : f32
    %253 = vector.broadcast %cst_87 : f32 to vector<2x32xf32>
    %254 = arith.addf %253, %252 : vector<2x32xf32>
    %255 = arith.divf %253, %254 : vector<2x32xf32>
    %256 = arith.mulf %247, %229 : vector<2x32xf32>
    %257 = arith.mulf %241, %249 : vector<2x32xf32>
    %258 = arith.addf %256, %257 : vector<2x32xf32>
    %259 = math.tanh %258 : vector<2x32xf32>
    %260 = arith.mulf %255, %259 : vector<2x32xf32>
    %261 = arith.addi %86, %c3_i32_81 : i32
    %c8_i32_88 = arith.constant 8 : i32
    %262 = arith.cmpi slt, %261, %c8_i32_88 : i32
    %263 = arith.extui %262 : i1 to i32
    %264 = arith.sitofp %263 : i32 to f32
    %265 = vector.broadcast %264 : f32 to vector<2x32xf32>
    %266 = arith.mulf %265, %260 : vector<2x32xf32>
    %cst_89 = arith.constant 1.000000e+00 : f32
    %267 = arith.subf %cst_89, %264 : f32
    %268 = vector.broadcast %267 : f32 to vector<2x32xf32>
    %269 = arith.mulf %268, %223 : vector<2x32xf32>
    %270 = arith.addf %266, %269 : vector<2x32xf32>
    %271 = vector.broadcast %264 : f32 to vector<2x32xf32>
    %272 = arith.mulf %271, %258 : vector<2x32xf32>
    %cst_90 = arith.constant 1.000000e+00 : f32
    %273 = arith.subf %cst_90, %264 : f32
    %274 = vector.broadcast %273 : f32 to vector<2x32xf32>
    %275 = arith.mulf %274, %229 : vector<2x32xf32>
    %276 = arith.addf %272, %275 : vector<2x32xf32>
    %c4_i32_91 = arith.constant 4 : i32
    %277 = arith.truncf %270 : vector<2x32xf32> to vector<2x32xbf16>
    %cst_92 = arith.constant dense<0.000000e+00> : vector<2x128xf32>
    %278 = tpu.matmul %277, %4, %cst_92 {dimension_numbers = #tpu.dot_dimension_numbers<[1], [0], [0], [1], [0, 0, 1, 1], [], []>} : vector<2x32xbf16>, vector<32x128xbf16>, vector<2x128xf32> -> vector<2x128xf32>
    %279 = arith.index_cast %c4_i32_91 : i32 to index
    %c0_93 = arith.constant 0 : index
    %c0_94 = arith.constant 0 : index
    %280 = vector.load %arg7[%279, %c0_93, %c0_94] : memref<8x2x128xf32, #tpu.memory_space<vmem>>, vector<1x2x128xf32>
    %281 = vector.shape_cast %280 : vector<1x2x128xf32> to vector<2x128xf32>
    %282 = arith.addf %281, %278 : vector<2x128xf32>
    %283 = vector.extract_strided_slice %282 {offsets = [0, 0], sizes = [2, 32], strides = [1, 1]} : vector<2x128xf32> to vector<2x32xf32>
    %284 = arith.negf %283 : vector<2x32xf32>
    %285 = math.exp %284 : vector<2x32xf32>
    %cst_95 = arith.constant 1.000000e+00 : f32
    %286 = vector.broadcast %cst_95 : f32 to vector<2x32xf32>
    %287 = arith.addf %286, %285 : vector<2x32xf32>
    %288 = arith.divf %286, %287 : vector<2x32xf32>
    %289 = vector.extract_strided_slice %282 {offsets = [0, 32], sizes = [2, 32], strides = [1, 1]} : vector<2x128xf32> to vector<2x32xf32>
    %290 = arith.negf %289 : vector<2x32xf32>
    %291 = math.exp %290 : vector<2x32xf32>
    %cst_96 = arith.constant 1.000000e+00 : f32
    %292 = vector.broadcast %cst_96 : f32 to vector<2x32xf32>
    %293 = arith.addf %292, %291 : vector<2x32xf32>
    %294 = arith.divf %292, %293 : vector<2x32xf32>
    %295 = vector.extract_strided_slice %282 {offsets = [0, 64], sizes = [2, 32], strides = [1, 1]} : vector<2x128xf32> to vector<2x32xf32>
    %296 = math.tanh %295 : vector<2x32xf32>
    %297 = vector.extract_strided_slice %282 {offsets = [0, 96], sizes = [2, 32], strides = [1, 1]} : vector<2x128xf32> to vector<2x32xf32>
    %298 = arith.negf %297 : vector<2x32xf32>
    %299 = math.exp %298 : vector<2x32xf32>
    %cst_97 = arith.constant 1.000000e+00 : f32
    %300 = vector.broadcast %cst_97 : f32 to vector<2x32xf32>
    %301 = arith.addf %300, %299 : vector<2x32xf32>
    %302 = arith.divf %300, %301 : vector<2x32xf32>
    %303 = arith.mulf %294, %276 : vector<2x32xf32>
    %304 = arith.mulf %288, %296 : vector<2x32xf32>
    %305 = arith.addf %303, %304 : vector<2x32xf32>
    %306 = math.tanh %305 : vector<2x32xf32>
    %307 = arith.mulf %302, %306 : vector<2x32xf32>
    %308 = arith.addi %86, %c4_i32_91 : i32
    %c8_i32_98 = arith.constant 8 : i32
    %309 = arith.cmpi slt, %308, %c8_i32_98 : i32
    %310 = arith.extui %309 : i1 to i32
    %311 = arith.sitofp %310 : i32 to f32
    %312 = vector.broadcast %311 : f32 to vector<2x32xf32>
    %313 = arith.mulf %312, %307 : vector<2x32xf32>
    %cst_99 = arith.constant 1.000000e+00 : f32
    %314 = arith.subf %cst_99, %311 : f32
    %315 = vector.broadcast %314 : f32 to vector<2x32xf32>
    %316 = arith.mulf %315, %270 : vector<2x32xf32>
    %317 = arith.addf %313, %316 : vector<2x32xf32>
    %318 = vector.broadcast %311 : f32 to vector<2x32xf32>
    %319 = arith.mulf %318, %305 : vector<2x32xf32>
    %cst_100 = arith.constant 1.000000e+00 : f32
    %320 = arith.subf %cst_100, %311 : f32
    %321 = vector.broadcast %320 : f32 to vector<2x32xf32>
    %322 = arith.mulf %321, %276 : vector<2x32xf32>
    %323 = arith.addf %319, %322 : vector<2x32xf32>
    %c5_i32_101 = arith.constant 5 : i32
    %324 = arith.truncf %317 : vector<2x32xf32> to vector<2x32xbf16>
    %cst_102 = arith.constant dense<0.000000e+00> : vector<2x128xf32>
    %325 = tpu.matmul %324, %4, %cst_102 {dimension_numbers = #tpu.dot_dimension_numbers<[1], [0], [0], [1], [0, 0, 1, 1], [], []>} : vector<2x32xbf16>, vector<32x128xbf16>, vector<2x128xf32> -> vector<2x128xf32>
    %326 = arith.index_cast %c5_i32_101 : i32 to index
    %c0_103 = arith.constant 0 : index
    %c0_104 = arith.constant 0 : index
    %327 = vector.load %arg7[%326, %c0_103, %c0_104] : memref<8x2x128xf32, #tpu.memory_space<vmem>>, vector<1x2x128xf32>
    %328 = vector.shape_cast %327 : vector<1x2x128xf32> to vector<2x128xf32>
    %329 = arith.addf %328, %325 : vector<2x128xf32>
    %330 = vector.extract_strided_slice %329 {offsets = [0, 0], sizes = [2, 32], strides = [1, 1]} : vector<2x128xf32> to vector<2x32xf32>
    %331 = arith.negf %330 : vector<2x32xf32>
    %332 = math.exp %331 : vector<2x32xf32>
    %cst_105 = arith.constant 1.000000e+00 : f32
    %333 = vector.broadcast %cst_105 : f32 to vector<2x32xf32>
    %334 = arith.addf %333, %332 : vector<2x32xf32>
    %335 = arith.divf %333, %334 : vector<2x32xf32>
    %336 = vector.extract_strided_slice %329 {offsets = [0, 32], sizes = [2, 32], strides = [1, 1]} : vector<2x128xf32> to vector<2x32xf32>
    %337 = arith.negf %336 : vector<2x32xf32>
    %338 = math.exp %337 : vector<2x32xf32>
    %cst_106 = arith.constant 1.000000e+00 : f32
    %339 = vector.broadcast %cst_106 : f32 to vector<2x32xf32>
    %340 = arith.addf %339, %338 : vector<2x32xf32>
    %341 = arith.divf %339, %340 : vector<2x32xf32>
    %342 = vector.extract_strided_slice %329 {offsets = [0, 64], sizes = [2, 32], strides = [1, 1]} : vector<2x128xf32> to vector<2x32xf32>
    %343 = math.tanh %342 : vector<2x32xf32>
    %344 = vector.extract_strided_slice %329 {offsets = [0, 96], sizes = [2, 32], strides = [1, 1]} : vector<2x128xf32> to vector<2x32xf32>
    %345 = arith.negf %344 : vector<2x32xf32>
    %346 = math.exp %345 : vector<2x32xf32>
    %cst_107 = arith.constant 1.000000e+00 : f32
    %347 = vector.broadcast %cst_107 : f32 to vector<2x32xf32>
    %348 = arith.addf %347, %346 : vector<2x32xf32>
    %349 = arith.divf %347, %348 : vector<2x32xf32>
    %350 = arith.mulf %341, %323 : vector<2x32xf32>
    %351 = arith.mulf %335, %343 : vector<2x32xf32>
    %352 = arith.addf %350, %351 : vector<2x32xf32>
    %353 = math.tanh %352 : vector<2x32xf32>
    %354 = arith.mulf %349, %353 : vector<2x32xf32>
    %355 = arith.addi %86, %c5_i32_101 : i32
    %c8_i32_108 = arith.constant 8 : i32
    %356 = arith.cmpi slt, %355, %c8_i32_108 : i32
    %357 = arith.extui %356 : i1 to i32
    %358 = arith.sitofp %357 : i32 to f32
    %359 = vector.broadcast %358 : f32 to vector<2x32xf32>
    %360 = arith.mulf %359, %354 : vector<2x32xf32>
    %cst_109 = arith.constant 1.000000e+00 : f32
    %361 = arith.subf %cst_109, %358 : f32
    %362 = vector.broadcast %361 : f32 to vector<2x32xf32>
    %363 = arith.mulf %362, %317 : vector<2x32xf32>
    %364 = arith.addf %360, %363 : vector<2x32xf32>
    %365 = vector.broadcast %358 : f32 to vector<2x32xf32>
    %366 = arith.mulf %365, %352 : vector<2x32xf32>
    %cst_110 = arith.constant 1.000000e+00 : f32
    %367 = arith.subf %cst_110, %358 : f32
    %368 = vector.broadcast %367 : f32 to vector<2x32xf32>
    %369 = arith.mulf %368, %323 : vector<2x32xf32>
    %370 = arith.addf %366, %369 : vector<2x32xf32>
    %c6_i32_111 = arith.constant 6 : i32
    %371 = arith.truncf %364 : vector<2x32xf32> to vector<2x32xbf16>
    %cst_112 = arith.constant dense<0.000000e+00> : vector<2x128xf32>
    %372 = tpu.matmul %371, %4, %cst_112 {dimension_numbers = #tpu.dot_dimension_numbers<[1], [0], [0], [1], [0, 0, 1, 1], [], []>} : vector<2x32xbf16>, vector<32x128xbf16>, vector<2x128xf32> -> vector<2x128xf32>
    %373 = arith.index_cast %c6_i32_111 : i32 to index
    %c0_113 = arith.constant 0 : index
    %c0_114 = arith.constant 0 : index
    %374 = vector.load %arg7[%373, %c0_113, %c0_114] : memref<8x2x128xf32, #tpu.memory_space<vmem>>, vector<1x2x128xf32>
    %375 = vector.shape_cast %374 : vector<1x2x128xf32> to vector<2x128xf32>
    %376 = arith.addf %375, %372 : vector<2x128xf32>
    %377 = vector.extract_strided_slice %376 {offsets = [0, 0], sizes = [2, 32], strides = [1, 1]} : vector<2x128xf32> to vector<2x32xf32>
    %378 = arith.negf %377 : vector<2x32xf32>
    %379 = math.exp %378 : vector<2x32xf32>
    %cst_115 = arith.constant 1.000000e+00 : f32
    %380 = vector.broadcast %cst_115 : f32 to vector<2x32xf32>
    %381 = arith.addf %380, %379 : vector<2x32xf32>
    %382 = arith.divf %380, %381 : vector<2x32xf32>
    %383 = vector.extract_strided_slice %376 {offsets = [0, 32], sizes = [2, 32], strides = [1, 1]} : vector<2x128xf32> to vector<2x32xf32>
    %384 = arith.negf %383 : vector<2x32xf32>
    %385 = math.exp %384 : vector<2x32xf32>
    %cst_116 = arith.constant 1.000000e+00 : f32
    %386 = vector.broadcast %cst_116 : f32 to vector<2x32xf32>
    %387 = arith.addf %386, %385 : vector<2x32xf32>
    %388 = arith.divf %386, %387 : vector<2x32xf32>
    %389 = vector.extract_strided_slice %376 {offsets = [0, 64], sizes = [2, 32], strides = [1, 1]} : vector<2x128xf32> to vector<2x32xf32>
    %390 = math.tanh %389 : vector<2x32xf32>
    %391 = vector.extract_strided_slice %376 {offsets = [0, 96], sizes = [2, 32], strides = [1, 1]} : vector<2x128xf32> to vector<2x32xf32>
    %392 = arith.negf %391 : vector<2x32xf32>
    %393 = math.exp %392 : vector<2x32xf32>
    %cst_117 = arith.constant 1.000000e+00 : f32
    %394 = vector.broadcast %cst_117 : f32 to vector<2x32xf32>
    %395 = arith.addf %394, %393 : vector<2x32xf32>
    %396 = arith.divf %394, %395 : vector<2x32xf32>
    %397 = arith.mulf %388, %370 : vector<2x32xf32>
    %398 = arith.mulf %382, %390 : vector<2x32xf32>
    %399 = arith.addf %397, %398 : vector<2x32xf32>
    %400 = math.tanh %399 : vector<2x32xf32>
    %401 = arith.mulf %396, %400 : vector<2x32xf32>
    %402 = arith.addi %86, %c6_i32_111 : i32
    %c8_i32_118 = arith.constant 8 : i32
    %403 = arith.cmpi slt, %402, %c8_i32_118 : i32
    %404 = arith.extui %403 : i1 to i32
    %405 = arith.sitofp %404 : i32 to f32
    %406 = vector.broadcast %405 : f32 to vector<2x32xf32>
    %407 = arith.mulf %406, %401 : vector<2x32xf32>
    %cst_119 = arith.constant 1.000000e+00 : f32
    %408 = arith.subf %cst_119, %405 : f32
    %409 = vector.broadcast %408 : f32 to vector<2x32xf32>
    %410 = arith.mulf %409, %364 : vector<2x32xf32>
    %411 = arith.addf %407, %410 : vector<2x32xf32>
    %412 = vector.broadcast %405 : f32 to vector<2x32xf32>
    %413 = arith.mulf %412, %399 : vector<2x32xf32>
    %cst_120 = arith.constant 1.000000e+00 : f32
    %414 = arith.subf %cst_120, %405 : f32
    %415 = vector.broadcast %414 : f32 to vector<2x32xf32>
    %416 = arith.mulf %415, %370 : vector<2x32xf32>
    %417 = arith.addf %413, %416 : vector<2x32xf32>
    %c7_i32_121 = arith.constant 7 : i32
    %418 = arith.truncf %411 : vector<2x32xf32> to vector<2x32xbf16>
    %cst_122 = arith.constant dense<0.000000e+00> : vector<2x128xf32>
    %419 = tpu.matmul %418, %4, %cst_122 {dimension_numbers = #tpu.dot_dimension_numbers<[1], [0], [0], [1], [0, 0, 1, 1], [], []>} : vector<2x32xbf16>, vector<32x128xbf16>, vector<2x128xf32> -> vector<2x128xf32>
    %420 = arith.index_cast %c7_i32_121 : i32 to index
    %c0_123 = arith.constant 0 : index
    %c0_124 = arith.constant 0 : index
    %421 = vector.load %arg7[%420, %c0_123, %c0_124] : memref<8x2x128xf32, #tpu.memory_space<vmem>>, vector<1x2x128xf32>
    %422 = vector.shape_cast %421 : vector<1x2x128xf32> to vector<2x128xf32>
    %423 = arith.addf %422, %419 : vector<2x128xf32>
    %424 = vector.extract_strided_slice %423 {offsets = [0, 0], sizes = [2, 32], strides = [1, 1]} : vector<2x128xf32> to vector<2x32xf32>
    %425 = arith.negf %424 : vector<2x32xf32>
    %426 = math.exp %425 : vector<2x32xf32>
    %cst_125 = arith.constant 1.000000e+00 : f32
    %427 = vector.broadcast %cst_125 : f32 to vector<2x32xf32>
    %428 = arith.addf %427, %426 : vector<2x32xf32>
    %429 = arith.divf %427, %428 : vector<2x32xf32>
    %430 = vector.extract_strided_slice %423 {offsets = [0, 32], sizes = [2, 32], strides = [1, 1]} : vector<2x128xf32> to vector<2x32xf32>
    %431 = arith.negf %430 : vector<2x32xf32>
    %432 = math.exp %431 : vector<2x32xf32>
    %cst_126 = arith.constant 1.000000e+00 : f32
    %433 = vector.broadcast %cst_126 : f32 to vector<2x32xf32>
    %434 = arith.addf %433, %432 : vector<2x32xf32>
    %435 = arith.divf %433, %434 : vector<2x32xf32>
    %436 = vector.extract_strided_slice %423 {offsets = [0, 64], sizes = [2, 32], strides = [1, 1]} : vector<2x128xf32> to vector<2x32xf32>
    %437 = math.tanh %436 : vector<2x32xf32>
    %438 = vector.extract_strided_slice %423 {offsets = [0, 96], sizes = [2, 32], strides = [1, 1]} : vector<2x128xf32> to vector<2x32xf32>
    %439 = arith.negf %438 : vector<2x32xf32>
    %440 = math.exp %439 : vector<2x32xf32>
    %cst_127 = arith.constant 1.000000e+00 : f32
    %441 = vector.broadcast %cst_127 : f32 to vector<2x32xf32>
    %442 = arith.addf %441, %440 : vector<2x32xf32>
    %443 = arith.divf %441, %442 : vector<2x32xf32>
    %444 = arith.mulf %435, %417 : vector<2x32xf32>
    %445 = arith.mulf %429, %437 : vector<2x32xf32>
    %446 = arith.addf %444, %445 : vector<2x32xf32>
    %447 = math.tanh %446 : vector<2x32xf32>
    %448 = arith.mulf %443, %447 : vector<2x32xf32>
    %449 = arith.addi %86, %c7_i32_121 : i32
    %c8_i32_128 = arith.constant 8 : i32
    %450 = arith.cmpi slt, %449, %c8_i32_128 : i32
    %451 = arith.extui %450 : i1 to i32
    %452 = arith.sitofp %451 : i32 to f32
    %453 = vector.broadcast %452 : f32 to vector<2x32xf32>
    %454 = arith.mulf %453, %448 : vector<2x32xf32>
    %cst_129 = arith.constant 1.000000e+00 : f32
    %455 = arith.subf %cst_129, %452 : f32
    %456 = vector.broadcast %455 : f32 to vector<2x32xf32>
    %457 = arith.mulf %456, %411 : vector<2x32xf32>
    %458 = arith.addf %454, %457 : vector<2x32xf32>
    %459 = vector.broadcast %452 : f32 to vector<2x32xf32>
    %460 = arith.mulf %459, %446 : vector<2x32xf32>
    %cst_130 = arith.constant 1.000000e+00 : f32
    %461 = arith.subf %cst_130, %452 : f32
    %462 = vector.broadcast %461 : f32 to vector<2x32xf32>
    %463 = arith.mulf %462, %417 : vector<2x32xf32>
    %464 = arith.addf %460, %463 : vector<2x32xf32>
    %c8_i32_131 = arith.constant 8 : i32
    %c0_132 = arith.constant 0 : index
    %c0_133 = arith.constant 0 : index
    %465 = vector.load %arg8[%c0_132, %c0_133] : memref<2x32xf32, #tpu.memory_space<vmem>>, vector<2x32xf32>
    tpu.vector_store %arg8[%c0_132, %c0_133], %458 {strides = array<i32>} : memref<2x32xf32, #tpu.memory_space<vmem>>, vector<2x32xf32>,
    %c0_134 = arith.constant 0 : index
    %c0_135 = arith.constant 0 : index
    %466 = vector.load %arg9[%c0_134, %c0_135] : memref<2x32xf32, #tpu.memory_space<vmem>>, vector<2x32xf32>
    tpu.vector_store %arg9[%c0_134, %c0_135], %464 {strides = array<i32>} : memref<2x32xf32, #tpu.memory_space<vmem>>, vector<2x32xf32>,
    %c0_i32_136 = arith.constant 0 : i32
    %467 = arith.cmpi eq, %arg1, %c0_i32_136 : i32
    %468 = arith.extui %467 : i1 to i32
    %c0_i32_137 = arith.constant 0 : i32
    %469 = arith.cmpi ne, %468, %c0_i32_137 : i32
    scf.if %469 {
      %c0_138 = arith.constant 0 : index
      %c0_139 = arith.constant 0 : index
      %470 = vector.load %arg6[%c0_138, %c0_139] : memref<2x32xf32, #tpu.memory_space<vmem>>, vector<2x32xf32>
      tpu.vector_store %arg6[%c0_138, %c0_139], %458 {strides = array<i32>} : memref<2x32xf32, #tpu.memory_space<vmem>>, vector<2x32xf32>,
    } else {
    }
    return
  }
  func.func @transform_0(%arg0: i32, %arg1: i32) -> (i32, i32, i32) {
    %c0_i32 = arith.constant 0 : i32
    %c0_i32_0 = arith.constant 0 : i32
    return %arg1, %arg0, %c0_i32 : i32, i32, i32
  }
  func.func @transform_1(%arg0: i32, %arg1: i32) -> (i32, i32) {
    %c0_i32 = arith.constant 0 : i32
    %c0_i32_0 = arith.constant 0 : i32
    %c0_i32_1 = arith.constant 0 : i32
    return %c0_i32, %c0_i32_0 : i32, i32
  }
  func.func @transform_2(%arg0: i32, %arg1: i32) -> (i32, i32) {
    %c0_i32 = arith.constant 0 : i32
    %c0_i32_0 = arith.constant 0 : i32
    %c0_i32_1 = arith.constant 0 : i32
    return %c0_i32, %c0_i32_0 : i32, i32
  }
  func.func @transform_3(%arg0: i32, %arg1: i32) -> (i32, i32) {
    %c0_i32 = arith.constant 0 : i32
    %c0_i32_0 = arith.constant 0 : i32
    %c0_i32_1 = arith.constant 0 : i32
    return %c0_i32, %c0_i32_0 : i32, i32
  }
  func.func @transform_4(%arg0: i32, %arg1: i32) -> (i32, i32) {
    %c0_i32 = arith.constant 0 : i32
    %c0_i32_0 = arith.constant 0 : i32
    return %arg0, %c0_i32 : i32, i32
  }
}

</mosaic_0001>

<llo_original>
// kernel: tpu_custom_call.1
$region0: #{tpu_custom_call.1}
  #allocation0 [shape = 'u32[]', space=smem, size = 0x4, offset = 0x4, fixed_abs, tag = 'smem constant byte address 0x4 - core index']
  #allocation1 [shape = 'u32[144,128]{1,0:T(1,128)}', space=vmem, size = 0x12000, scoped, tag = 'internal scratch']
  #allocation2 [shape = 'f32[8,2,128]{2,1,0:T(2,128)}', space=vmem, size = 0x2000, scoped, tag = 'scratch operand']
  #allocation3 [shape = 'f32[2,32]{1,0:T(2,128)}', space=vmem, size = 0x400, scoped, tag = 'scratch operand']
  #allocation4 [shape = 'f32[2,32]{1,0:T(2,128)}', space=vmem, size = 0x400, scoped, tag = 'scratch operand']
  %s0 = inlined_call_operand.hbm [shape: bf16[8,2,32], index: 0, kind: input, shape index: {}]
  %s1 = inlined_call_operand.hbm [shape: bf16[32,128], index: 1, kind: input, shape index: {}]
  %s2 = inlined_call_operand.hbm [shape: bf16[32,128], index: 2, kind: input, shape index: {}]
  %s3 = inlined_call_operand.vmem [shape: f32[1,128], index: 3, kind: input, shape index: {}]
  %s4 = inlined_call_operand.hbm [shape: f32[2,32], index: 4, kind: output, shape index: {}]
  %s5 = sld [smem:[#allocation0]]
  $region46: #{tpu_custom_call.1} parent=0
    _
  %s7 = ssub.s32 1, %s5
  %s8 = scalar_select 0, %s7, %s5
  $region1: #{tpu_custom_call.1} parent=0
    #allocation5 [shape = 'u8[4096]{0}', space=vmem, size = 0x1000, scoped, tag = 'input window, operand 0, single buffered']
    #allocation6 [shape = 's32[1]{0}', space=sflag, size = 0x4, scoped, tag = 'scoped memory for tpu_custom_call.1']
    #allocation7 [shape = 's32[1]{0}', space=sflag, size = 0x4, scoped, tag = 'scoped memory for tpu_custom_call.1']
    #allocation8 [shape = 'u8[8192]{0}', space=vmem, size = 0x2000, scoped, tag = 'input window, operand 1, single buffered']
    #allocation9 [shape = 's32[1]{0}', space=sflag, size = 0x4, scoped, tag = 'scoped memory for tpu_custom_call.1']
    #allocation10 [shape = 'u8[8192]{0}', space=vmem, size = 0x2000, scoped, tag = 'input window, operand 2, single buffered']
    #allocation11 [shape = 'u8[1024]{0}', space=vmem, size = 0x400, scoped, tag = 'output window, operand 0, single buffered']
    %9 = vsyncpa [#allocation6], 0
    %10 = vsyncpa [#allocation9], 0
    %11 = vsyncpa [#allocation7], 0
    // Predicated region
    $region2: #{tpu_custom_call.1} parent=1 // pred_check
      _
    $region3: #{tpu_custom_call.1} parent=1 // pred_check_branch
      %13 = sbr.rel (0) target = $region5
    $region4: #{tpu_custom_call.1} parent=1 // pred_region
      %s15 = ssub.s32 128, 128
      %16 = vsyncadd [#allocation6], %s15
      %s17 = sshll.u32 [#allocation5], 4
      %s18 = int_to_ptr.vmem [resolvable:$true] %s17
      %23 = dma.hbm_to_vmem [thread:$0]  %s0, 128, %s18, [#allocation6], 16, 16, 1
    $region5: #{tpu_custom_call.1} parent=1 // pred_fallthru
      _
    // Predicated region
    $region6: #{tpu_custom_call.1} parent=1 // pred_check
      _
    $region7: #{tpu_custom_call.1} parent=1 // pred_check_branch
      %25 = sbr.rel (0) target = $region9
    $region8: #{tpu_custom_call.1} parent=1 // pred_region
      %s27 = ssub.s32 256, 256
      %28 = vsyncadd [#allocation9], %s27
      %s29 = sshll.u32 [#allocation8], 4
      %s30 = int_to_ptr.vmem [resolvable:$true] %s29
      %35 = dma.hbm_to_vmem [thread:$0]  %s1, 256, %s30, [#allocation9], 64, 64, 4
    $region9: #{tpu_custom_call.1} parent=1 // pred_fallthru
      _
    // Predicated region
    $region10: #{tpu_custom_call.1} parent=1 // pred_check
      _
    $region11: #{tpu_custom_call.1} parent=1 // pred_check_branch
      %37 = sbr.rel (0) target = $region13
    $region12: #{tpu_custom_call.1} parent=1 // pred_region
      %s39 = ssub.s32 256, 256
      %40 = vsyncadd [#allocation9], %s39
      %s41 = sshll.u32 [#allocation10], 4
      %s42 = int_to_ptr.vmem [resolvable:$true] %s41
      %47 = dma.hbm_to_vmem [thread:$0]  %s2, 256, %s42, [#allocation9], 64, 64, 4
    $region13: #{tpu_custom_call.1} parent=1 // pred_fallthru
      _
    // Predicated region
    $region14: #{tpu_custom_call.1} parent=1 // pred_check
      _
    $region15: #{tpu_custom_call.1} parent=1 // pred_check_branch
      %49 = sbr.rel (0) target = $region17
    $region16: #{tpu_custom_call.1} parent=1 // pred_region
      _
    $region17: #{tpu_custom_call.1} parent=1 // pred_fallthru
      _
    // Predicated region
    $region18: #{tpu_custom_call.1} parent=1 // pred_check
      _
    $region19: #{tpu_custom_call.1} parent=1 // pred_check_branch
      %51 = sbr.rel (0) target = $region21
    $region20: #{tpu_custom_call.1} parent=1 // pred_region
      %52 = dma.done [#allocation6], 128
    $region21: #{tpu_custom_call.1} parent=1 // pred_fallthru
      _
    // Predicated region
    $region22: #{tpu_custom_call.1} parent=1 // pred_check
      _
    $region23: #{tpu_custom_call.1} parent=1 // pred_check_branch
      %54 = sbr.rel (0) target = $region25
    $region24: #{tpu_custom_call.1} parent=1 // pred_region
      %55 = dma.done [#allocation9], 256
    $region25: #{tpu_custom_call.1} parent=1 // pred_fallthru
      _
    // Predicated region
    $region26: #{tpu_custom_call.1} parent=1 // pred_check
      _
    $region27: #{tpu_custom_call.1} parent=1 // pred_check_branch
      %57 = sbr.rel (0) target = $region29
    $region28: #{tpu_custom_call.1} parent=1 // pred_region
      %58 = dma.done [#allocation9], 256
    $region29: #{tpu_custom_call.1} parent=1 // pred_fallthru
      _
    %p60 = scmp.eq.s32.totalorder 0, 0
    // Predicated region
    $region30: #{tpu_custom_call.1} parent=1 // pred_check
      %p61 = pneg %p60
    $region31: #{tpu_custom_call.1} parent=1 // pred_check_branch
      %63 = sbr.rel (%p61) target = $region33
    $region32: #{tpu_custom_call.1} parent=1 // pred_region
      %vm64 = vcmask 254976
      %65 = vst.msk [vmem:[#allocation3] sm:$0x3] %vm64, 0.0
      %66 = vst.msk [vmem:[#allocation4] sm:$0x3] %vm64, 0.0
    $region33: #{tpu_custom_call.1} parent=1 // pred_fallthru
      _
    %v67 = vld [vmem:[#allocation8] sm:$0xf]
    %v68 = vld [vmem:[#allocation8 + $0x4] sm:$0xf]
    %v69 = vld [vmem:[#allocation8 + $0x8] sm:$0xf]
    %v70 = vld [vmem:[#allocation8 + $0xc] sm:$0xf]
    %v71 = vld [vmem:[#allocation10] sm:$0xf]
    %v72 = vld [vmem:[#allocation10 + $0x4] sm:$0xf]
    %v73 = vld [vmem:[#allocation10 + $0x8] sm:$0xf]
    %v74 = vld [vmem:[#allocation10 + $0xc] sm:$0xf]
    %v75 = vld [vmem:[%s3] sm:$0x1]
    %v76 = vld [vmem:[#allocation5] sm:$0x1]
    %v78 = vlaneseq
    %v79 = vshrl.u32 %v78, 7
    %v80 = vsub.s32 0, %v79
    %v81 = vrot.slane %v75, %v80
    %v87 = vunpack.c.l.b16 %v67
    %v88 = vunpack.c.l.b16 %v68
    %v89 = vunpack.c.l.b16 %v69
    %v90 = vunpack.c.l.b16 %v70
    %v91 = vpack.c.b16 %v88, %v87
    %v92 = vpack.c.b16 %v90, %v89
    %vm95 = vcmask 261120
    %v97 = vsel %vm95, %v76, 0
    %99 = vmatprep.subr.bf16.mxu0 0
    %100 = vmatpush1.bf16.msra.mxu0 %v91
    %101 = vmatprep.subr.bf16.mxu0 0
    %102 = vmatpush1.bf16.msra.mxu0 %v92
    %103 = vmatprep.subr.bf16.mxu0 0
    %104 = vmatpush1.bf16.msra.mxu0 0
    %105 = vmatprep.subr.bf16.mxu0 0
    %106 = vmatpush1.bf16.msra.mxu0 0
    %107 = vmatprep.subr.bf16.mxu0 0
    %108 = vmatpush1.bf16.msra.mxu0 0
    %109 = vmatprep.subr.bf16.mxu0 0
    %110 = vmatpush1.bf16.msra.mxu0 0
    %111 = vmatprep.subr.bf16.mxu0 0
    %112 = vmatpush1.bf16.msra.mxu0 0
    %113 = vmatprep.subr.bf16.mxu0 0
    %114 = vmatpush1.bf16.msra.mxu0 0
    %115 = vmatprep.subr.bf16.mxu0 0
    %116 = vmatpush1.bf16.msra.mxu0 0
    %117 = vmatprep.subr.bf16.mxu0 0
    %118 = vmatpush1.bf16.msra.mxu0 0
    %119 = vmatprep.subr.bf16.mxu0 0
    %120 = vmatpush1.bf16.msra.mxu0 0
    %121 = vmatprep.subr.bf16.mxu0 0
    %122 = vmatpush1.bf16.msra.mxu0 0
    %123 = vmatprep.subr.bf16.mxu0 0
    %124 = vmatpush1.bf16.msra.mxu0 0
    %125 = vmatprep.subr.bf16.mxu0 0
    %126 = vmatpush1.bf16.msra.mxu0 0
    %127 = vmatprep.subr.bf16.mxu0 0
    %128 = vmatpush1.bf16.msra.mxu0 0
    %129 = vmatprep.subr.bf16.mxu0 0
    %130 = vmatpush1.bf16.msra.mxu0 0
    %131 = vmatprep.mubr.bf16.mxu0 0
    %132 = vmatmul.mubr.bf16.gmra.mrb[0].mxu0 %v97
    %v133 = vpop.f32.mrb[0].mxu0
    %v134 = vadd.f32 %v81, %v133
    %v135 = vpop.f32.mrb[0].mxu0
    %v136 = vpop.f32.mrb[0].mxu0
    %v137 = vpop.f32.mrb[0].mxu0
    %138 = vdwg.mxu0
    %139 = vst [vmem:[#allocation2] sm:$0x3] %v134
    %s140 = scalar_lea.vmem [#allocation5], 1
    %v141 = vld [vmem:[%s140] sm:$0x1]
    %v143 = vsel %vm95, %v141, 0
    %145 = vmatprep.subr.bf16.mxu0 0
    %146 = vmatpush1.bf16.msra.mxu0 %v91
    %147 = vmatprep.subr.bf16.mxu0 0
    %148 = vmatpush1.bf16.msra.mxu0 %v92
    %149 = vmatprep.subr.bf16.mxu0 0
    %150 = vmatpush1.bf16.msra.mxu0 0
    %151 = vmatprep.subr.bf16.mxu0 0
    %152 = vmatpush1.bf16.msra.mxu0 0
    %153 = vmatprep.subr.bf16.mxu0 0
    %154 = vmatpush1.bf16.msra.mxu0 0
    %155 = vmatprep.subr.bf16.mxu0 0
    %156 = vmatpush1.bf16.msra.mxu0 0
    %157 = vmatprep.subr.bf16.mxu0 0
    %158 = vmatpush1.bf16.msra.mxu0 0
    %159 = vmatprep.subr.bf16.mxu0 0
    %160 = vmatpush1.bf16.msra.mxu0 0
    %161 = vmatprep.subr.bf16.mxu0 0
    %162 = vmatpush1.bf16.msra.mxu0 0
    %163 = vmatprep.subr.bf16.mxu0 0
    %164 = vmatpush1.bf16.msra.mxu0 0
    %165 = vmatprep.subr.bf16.mxu0 0
    %166 = vmatpush1.bf16.msra.mxu0 0
    %167 = vmatprep.subr.bf16.mxu0 0
    %168 = vmatpush1.bf16.msra.mxu0 0
    %169 = vmatprep.subr.bf16.mxu0 0
    %170 = vmatpush1.bf16.msra.mxu0 0
    %171 = vmatprep.subr.bf16.mxu0 0
    %172 = vmatpush1.bf16.msra.mxu0 0
    %173 = vmatprep.subr.bf16.mxu0 0
    %174 = vmatpush1.bf16.msra.mxu0 0
    %175 = vmatprep.subr.bf16.mxu0 0
    %176 = vmatpush1.bf16.msra.mxu0 0
    %177 = vmatprep.mubr.bf16.mxu0 0
    %178 = vmatmul.mubr.bf16.gmra.mrb[0].mxu0 %v143
    %v179 = vpop.f32.mrb[0].mxu0
    %v180 = vadd.f32 %v81, %v179
    %v181 = vpop.f32.mrb[0].mxu0
    %v182 = vpop.f32.mrb[0].mxu0
    %v183 = vpop.f32.mrb[0].mxu0
    %184 = vdwg.mxu0
    %s185 = scalar_lea.vmem [#allocation2], 2
    %186 = vst [vmem:[%s185] sm:$0x3] %v180
    %s187 = scalar_lea.vmem [#allocation5], 2
    %v188 = vld [vmem:[%s187] sm:$0x1]
    %v190 = vsel %vm95, %v188, 0
    %192 = vmatprep.subr.bf16.mxu0 0
    %193 = vmatpush1.bf16.msra.mxu0 %v91
    %194 = vmatprep.subr.bf16.mxu0 0
    %195 = vmatpush1.bf16.msra.mxu0 %v92
    %196 = vmatprep.subr.bf16.mxu0 0
    %197 = vmatpush1.bf16.msra.mxu0 0
    %198 = vmatprep.subr.bf16.mxu0 0
    %199 = vmatpush1.bf16.msra.mxu0 0
    %200 = vmatprep.subr.bf16.mxu0 0
    %201 = vmatpush1.bf16.msra.mxu0 0
    %202 = vmatprep.subr.bf16.mxu0 0
    %203 = vmatpush1.bf16.msra.mxu0 0
    %204 = vmatprep.subr.bf16.mxu0 0
    %205 = vmatpush1.bf16.msra.mxu0 0
    %206 = vmatprep.subr.bf16.mxu0 0
    %207 = vmatpush1.bf16.msra.mxu0 0
    %208 = vmatprep.subr.bf16.mxu0 0
    %209 = vmatpush1.bf16.msra.mxu0 0
    %210 = vmatprep.subr.bf16.mxu0 0
    %211 = vmatpush1.bf16.msra.mxu0 0
    %212 = vmatprep.subr.bf16.mxu0 0
    %213 = vmatpush1.bf16.msra.mxu0 0
    %214 = vmatprep.subr.bf16.mxu0 0
    %215 = vmatpush1.bf16.msra.mxu0 0
    %216 = vmatprep.subr.bf16.mxu0 0
    %217 = vmatpush1.bf16.msra.mxu0 0
    %218 = vmatprep.subr.bf16.mxu0 0
    %219 = vmatpush1.bf16.msra.mxu0 0
    %220 = vmatprep.subr.bf16.mxu0 0
    %221 = vmatpush1.bf16.msra.mxu0 0
    %222 = vmatprep.subr.bf16.mxu0 0
    %223 = vmatpush1.bf16.msra.mxu0 0
    %224 = vmatprep.mubr.bf16.mxu0 0
    %225 = vmatmul.mubr.bf16.gmra.mrb[0].mxu0 %v190
    %v226 = vpop.f32.mrb[0].mxu0
    %v227 = vadd.f32 %v81, %v226
    %v228 = vpop.f32.mrb[0].mxu0
    %v229 = vpop.f32.mrb[0].mxu0
    %v230 = vpop.f32.mrb[0].mxu0
    %231 = vdwg.mxu0
    %s232 = scalar_lea.vmem [#allocation2], 4
    %233 = vst [vmem:[%s232] sm:$0x3] %v227
    %s234 = scalar_lea.vmem [#allocation5], 3
    %v235 = vld [vmem:[%s234] sm:$0x1]
    %v237 = vsel %vm95, %v235, 0
    %239 = vmatprep.subr.bf16.mxu0 0
    %240 = vmatpush1.bf16.msra.mxu0 %v91
    %241 = vmatprep.subr.bf16.mxu0 0
    %242 = vmatpush1.bf16.msra.mxu0 %v92
    %243 = vmatprep.subr.bf16.mxu0 0
    %244 = vmatpush1.bf16.msra.mxu0 0
    %245 = vmatprep.subr.bf16.mxu0 0
    %246 = vmatpush1.bf16.msra.mxu0 0
    %247 = vmatprep.subr.bf16.mxu0 0
    %248 = vmatpush1.bf16.msra.mxu0 0
    %249 = vmatprep.subr.bf16.mxu0 0
    %250 = vmatpush1.bf16.msra.mxu0 0
    %251 = vmatprep.subr.bf16.mxu0 0
    %252 = vmatpush1.bf16.msra.mxu0 0
    %253 = vmatprep.subr.bf16.mxu0 0
    %254 = vmatpush1.bf16.msra.mxu0 0
    %255 = vmatprep.subr.bf16.mxu0 0
    %256 = vmatpush1.bf16.msra.mxu0 0
    %257 = vmatprep.subr.bf16.mxu0 0
    %258 = vmatpush1.bf16.msra.mxu0 0
    %259 = vmatprep.subr.bf16.mxu0 0
    %260 = vmatpush1.bf16.msra.mxu0 0
    %261 = vmatprep.subr.bf16.mxu0 0
    %262 = vmatpush1.bf16.msra.mxu0 0
    %263 = vmatprep.subr.bf16.mxu0 0
    %264 = vmatpush1.bf16.msra.mxu0 0
    %265 = vmatprep.subr.bf16.mxu0 0
    %266 = vmatpush1.bf16.msra.mxu0 0
    %267 = vmatprep.subr.bf16.mxu0 0
    %268 = vmatpush1.bf16.msra.mxu0 0
    %269 = vmatprep.subr.bf16.mxu0 0
    %270 = vmatpush1.bf16.msra.mxu0 0
    %271 = vmatprep.mubr.bf16.mxu0 0
    %272 = vmatmul.mubr.bf16.gmra.mrb[0].mxu0 %v237
    %v273 = vpop.f32.mrb[0].mxu0
    %v274 = vadd.f32 %v81, %v273
    %v275 = vpop.f32.mrb[0].mxu0
    %v276 = vpop.f32.mrb[0].mxu0
    %v277 = vpop.f32.mrb[0].mxu0
    %278 = vdwg.mxu0
    %s279 = scalar_lea.vmem [#allocation2], 6
    %280 = vst [vmem:[%s279] sm:$0x3] %v274
    %s281 = scalar_lea.vmem [#allocation5], 4
    %v282 = vld [vmem:[%s281] sm:$0x1]
    %v284 = vsel %vm95, %v282, 0
    %286 = vmatprep.subr.bf16.mxu0 0
    %287 = vmatpush1.bf16.msra.mxu0 %v91
    %288 = vmatprep.subr.bf16.mxu0 0
    %289 = vmatpush1.bf16.msra.mxu0 %v92
    %290 = vmatprep.subr.bf16.mxu0 0
    %291 = vmatpush1.bf16.msra.mxu0 0
    %292 = vmatprep.subr.bf16.mxu0 0
    %293 = vmatpush1.bf16.msra.mxu0 0
    %294 = vmatprep.subr.bf16.mxu0 0
    %295 = vmatpush1.bf16.msra.mxu0 0
    %296 = vmatprep.subr.bf16.mxu0 0
    %297 = vmatpush1.bf16.msra.mxu0 0
    %298 = vmatprep.subr.bf16.mxu0 0
    %299 = vmatpush1.bf16.msra.mxu0 0
    %300 = vmatprep.subr.bf16.mxu0 0
    %301 = vmatpush1.bf16.msra.mxu0 0
    %302 = vmatprep.subr.bf16.mxu0 0
    %303 = vmatpush1.bf16.msra.mxu0 0
    %304 = vmatprep.subr.bf16.mxu0 0
    %305 = vmatpush1.bf16.msra.mxu0 0
    %306 = vmatprep.subr.bf16.mxu0 0
    %307 = vmatpush1.bf16.msra.mxu0 0
    %308 = vmatprep.subr.bf16.mxu0 0
    %309 = vmatpush1.bf16.msra.mxu0 0
    %310 = vmatprep.subr.bf16.mxu0 0
    %311 = vmatpush1.bf16.msra.mxu0 0
    %312 = vmatprep.subr.bf16.mxu0 0
    %313 = vmatpush1.bf16.msra.mxu0 0
    %314 = vmatprep.subr.bf16.mxu0 0
    %315 = vmatpush1.bf16.msra.mxu0 0
    %316 = vmatprep.subr.bf16.mxu0 0
    %317 = vmatpush1.bf16.msra.mxu0 0
    %318 = vmatprep.mubr.bf16.mxu0 0
    %319 = vmatmul.mubr.bf16.gmra.mrb[0].mxu0 %v284
    %v320 = vpop.f32.mrb[0].mxu0
    %v321 = vadd.f32 %v81, %v320
    %v322 = vpop.f32.mrb[0].mxu0
    %v323 = vpop.f32.mrb[0].mxu0
    %v324 = vpop.f32.mrb[0].mxu0
    %325 = vdwg.mxu0
    %s326 = scalar_lea.vmem [#allocation2], 8
    %327 = vst [vmem:[%s326] sm:$0x3] %v321
    %s328 = scalar_lea.vmem [#allocation5], 5
    %v329 = vld [vmem:[%s328] sm:$0x1]
    %v331 = vsel %vm95, %v329, 0
    %333 = vmatprep.subr.bf16.mxu0 0
    %334 = vmatpush1.bf16.msra.mxu0 %v91
    %335 = vmatprep.subr.bf16.mxu0 0
    %336 = vmatpush1.bf16.msra.mxu0 %v92
    %337 = vmatprep.subr.bf16.mxu0 0
    %338 = vmatpush1.bf16.msra.mxu0 0
    %339 = vmatprep.subr.bf16.mxu0 0
    %340 = vmatpush1.bf16.msra.mxu0 0
    %341 = vmatprep.subr.bf16.mxu0 0
    %342 = vmatpush1.bf16.msra.mxu0 0
    %343 = vmatprep.subr.bf16.mxu0 0
    %344 = vmatpush1.bf16.msra.mxu0 0
    %345 = vmatprep.subr.bf16.mxu0 0
    %346 = vmatpush1.bf16.msra.mxu0 0
    %347 = vmatprep.subr.bf16.mxu0 0
    %348 = vmatpush1.bf16.msra.mxu0 0
    %349 = vmatprep.subr.bf16.mxu0 0
    %350 = vmatpush1.bf16.msra.mxu0 0
    %351 = vmatprep.subr.bf16.mxu0 0
    %352 = vmatpush1.bf16.msra.mxu0 0
    %353 = vmatprep.subr.bf16.mxu0 0
    %354 = vmatpush1.bf16.msra.mxu0 0
    %355 = vmatprep.subr.bf16.mxu0 0
    %356 = vmatpush1.bf16.msra.mxu0 0
    %357 = vmatprep.subr.bf16.mxu0 0
    %358 = vmatpush1.bf16.msra.mxu0 0
    %359 = vmatprep.subr.bf16.mxu0 0
    %360 = vmatpush1.bf16.msra.mxu0 0
    %361 = vmatprep.subr.bf16.mxu0 0
    %362 = vmatpush1.bf16.msra.mxu0 0
    %363 = vmatprep.subr.bf16.mxu0 0
    %364 = vmatpush1.bf16.msra.mxu0 0
    %365 = vmatprep.mubr.bf16.mxu0 0
    %366 = vmatmul.mubr.bf16.gmra.mrb[0].mxu0 %v331
    %v367 = vpop.f32.mrb[0].mxu0
    %v368 = vadd.f32 %v81, %v367
    %v369 = vpop.f32.mrb[0].mxu0
    %v370 = vpop.f32.mrb[0].mxu0
    %v371 = vpop.f32.mrb[0].mxu0
    %372 = vdwg.mxu0
    %s373 = scalar_lea.vmem [#allocation2], 10
    %374 = vst [vmem:[%s373] sm:$0x3] %v368
    %s375 = scalar_lea.vmem [#allocation5], 6
    %v376 = vld [vmem:[%s375] sm:$0x1]
    %v378 = vsel %vm95, %v376, 0
    %380 = vmatprep.subr.bf16.mxu0 0
    %381 = vmatpush1.bf16.msra.mxu0 %v91
    %382 = vmatprep.subr.bf16.mxu0 0
    %383 = vmatpush1.bf16.msra.mxu0 %v92
    %384 = vmatprep.subr.bf16.mxu0 0
    %385 = vmatpush1.bf16.msra.mxu0 0
    %386 = vmatprep.subr.bf16.mxu0 0
    %387 = vmatpush1.bf16.msra.mxu0 0
    %388 = vmatprep.subr.bf16.mxu0 0
    %389 = vmatpush1.bf16.msra.mxu0 0
    %390 = vmatprep.subr.bf16.mxu0 0
    %391 = vmatpush1.bf16.msra.mxu0 0
    %392 = vmatprep.subr.bf16.mxu0 0
    %393 = vmatpush1.bf16.msra.mxu0 0
    %394 = vmatprep.subr.bf16.mxu0 0
    %395 = vmatpush1.bf16.msra.mxu0 0
    %396 = vmatprep.subr.bf16.mxu0 0
    %397 = vmatpush1.bf16.msra.mxu0 0
    %398 = vmatprep.subr.bf16.mxu0 0
    %399 = vmatpush1.bf16.msra.mxu0 0
    %400 = vmatprep.subr.bf16.mxu0 0
    %401 = vmatpush1.bf16.msra.mxu0 0
    %402 = vmatprep.subr.bf16.mxu0 0
    %403 = vmatpush1.bf16.msra.mxu0 0
    %404 = vmatprep.subr.bf16.mxu0 0
    %405 = vmatpush1.bf16.msra.mxu0 0
    %406 = vmatprep.subr.bf16.mxu0 0
    %407 = vmatpush1.bf16.msra.mxu0 0
    %408 = vmatprep.subr.bf16.mxu0 0
    %409 = vmatpush1.bf16.msra.mxu0 0
    %410 = vmatprep.subr.bf16.mxu0 0
    %411 = vmatpush1.bf16.msra.mxu0 0
    %412 = vmatprep.mubr.bf16.mxu0 0
    %413 = vmatmul.mubr.bf16.gmra.mrb[0].mxu0 %v378
    %v414 = vpop.f32.mrb[0].mxu0
    %v415 = vadd.f32 %v81, %v414
    %v416 = vpop.f32.mrb[0].mxu0
    %v417 = vpop.f32.mrb[0].mxu0
    %v418 = vpop.f32.mrb[0].mxu0
    %419 = vdwg.mxu0
    %s420 = scalar_lea.vmem [#allocation2], 12
    %421 = vst [vmem:[%s420] sm:$0x3] %v415
    %s422 = scalar_lea.vmem [#allocation5], 7
    %v423 = vld [vmem:[%s422] sm:$0x1]
    %v425 = vsel %vm95, %v423, 0
    %427 = vmatprep.subr.bf16.mxu0 0
    %428 = vmatpush1.bf16.msra.mxu0 %v91
    %429 = vmatprep.subr.bf16.mxu0 0
    %430 = vmatpush1.bf16.msra.mxu0 %v92
    %431 = vmatprep.subr.bf16.mxu0 0
    %432 = vmatpush1.bf16.msra.mxu0 0
    %433 = vmatprep.subr.bf16.mxu0 0
    %434 = vmatpush1.bf16.msra.mxu0 0
    %435 = vmatprep.subr.bf16.mxu0 0
    %436 = vmatpush1.bf16.msra.mxu0 0
    %437 = vmatprep.subr.bf16.mxu0 0
    %438 = vmatpush1.bf16.msra.mxu0 0
    %439 = vmatprep.subr.bf16.mxu0 0
    %440 = vmatpush1.bf16.msra.mxu0 0
    %441 = vmatprep.subr.bf16.mxu0 0
    %442 = vmatpush1.bf16.msra.mxu0 0
    %443 = vmatprep.subr.bf16.mxu0 0
    %444 = vmatpush1.bf16.msra.mxu0 0
    %445 = vmatprep.subr.bf16.mxu0 0
    %446 = vmatpush1.bf16.msra.mxu0 0
    %447 = vmatprep.subr.bf16.mxu0 0
    %448 = vmatpush1.bf16.msra.mxu0 0
    %449 = vmatprep.subr.bf16.mxu0 0
    %450 = vmatpush1.bf16.msra.mxu0 0
    %451 = vmatprep.subr.bf16.mxu0 0
    %452 = vmatpush1.bf16.msra.mxu0 0
    %453 = vmatprep.subr.bf16.mxu0 0
    %454 = vmatpush1.bf16.msra.mxu0 0
    %455 = vmatprep.subr.bf16.mxu0 0
    %456 = vmatpush1.bf16.msra.mxu0 0
    %457 = vmatprep.subr.bf16.mxu0 0
    %458 = vmatpush1.bf16.msra.mxu0 0
    %459 = vmatprep.mubr.bf16.mxu0 0
    %460 = vmatmul.mubr.bf16.gmra.mrb[0].mxu0 %v425
    %v461 = vpop.f32.mrb[0].mxu0
    %v462 = vadd.f32 %v81, %v461
    %v463 = vpop.f32.mrb[0].mxu0
    %v464 = vpop.f32.mrb[0].mxu0
    %v465 = vpop.f32.mrb[0].mxu0
    %466 = vdwg.mxu0
    %s467 = scalar_lea.vmem [#allocation2], 14
    %468 = vst [vmem:[%s467] sm:$0x3] %v462
    %s469 = smul.u32 0, 8
    %v470 = vld [vmem:[#allocation3] sm:$0x3]
    %v471 = vld [vmem:[#allocation4] sm:$0x3]
    %v472 = vpack.c.bf16 %v470, %v470
    %v477 = vunpack.c.l.b16 %v71
    %v478 = vunpack.c.l.b16 %v72
    %v479 = vunpack.c.l.b16 %v73
    %v480 = vunpack.c.l.b16 %v74
    %v481 = vpack.c.b16 %v478, %v477
    %v482 = vpack.c.b16 %v480, %v479
    %v486 = vsel %vm95, %v472, 0
    %488 = vmatprep.subr.bf16.mxu0 0
    %489 = vmatpush1.bf16.msra.mxu0 %v481
    %490 = vmatprep.subr.bf16.mxu0 0
    %491 = vmatpush1.bf16.msra.mxu0 %v482
    %492 = vmatprep.subr.bf16.mxu0 0
    %493 = vmatpush1.bf16.msra.mxu0 0
    %494 = vmatprep.subr.bf16.mxu0 0
    %495 = vmatpush1.bf16.msra.mxu0 0
    %496 = vmatprep.subr.bf16.mxu0 0
    %497 = vmatpush1.bf16.msra.mxu0 0
    %498 = vmatprep.subr.bf16.mxu0 0
    %499 = vmatpush1.bf16.msra.mxu0 0
    %500 = vmatprep.subr.bf16.mxu0 0
    %501 = vmatpush1.bf16.msra.mxu0 0
    %502 = vmatprep.subr.bf16.mxu0 0
    %503 = vmatpush1.bf16.msra.mxu0 0
    %504 = vmatprep.subr.bf16.mxu0 0
    %505 = vmatpush1.bf16.msra.mxu0 0
    %506 = vmatprep.subr.bf16.mxu0 0
    %507 = vmatpush1.bf16.msra.mxu0 0
    %508 = vmatprep.subr.bf16.mxu0 0
    %509 = vmatpush1.bf16.msra.mxu0 0
    %510 = vmatprep.subr.bf16.mxu0 0
    %511 = vmatpush1.bf16.msra.mxu0 0
    %512 = vmatprep.subr.bf16.mxu0 0
    %513 = vmatpush1.bf16.msra.mxu0 0
    %514 = vmatprep.subr.bf16.mxu0 0
    %515 = vmatpush1.bf16.msra.mxu0 0
    %516 = vmatprep.subr.bf16.mxu0 0
    %517 = vmatpush1.bf16.msra.mxu0 0
    %518 = vmatprep.subr.bf16.mxu0 0
    %519 = vmatpush1.bf16.msra.mxu0 0
    %520 = vmatprep.mubr.bf16.mxu0 0
    %521 = vmatmul.mubr.bf16.gmra.mrb[0].mxu0 %v486
    %v522 = vpop.f32.mrb[0].mxu0
    %v523 = vadd.f32 0.0, %v522
    %v524 = vpop.f32.mrb[0].mxu0
    %v525 = vpop.f32.mrb[0].mxu0
    %v526 = vpop.f32.mrb[0].mxu0
    %527 = vdwg.mxu0
    %v528 = vld [vmem:[#allocation2] sm:$0x3]
    %v529 = vadd.f32 %v528, %v523
    %v530 = vxor.u32 %v529, 2147483648
    %v531 = vmul.f32 %v530, 1.442695
    %v532 = vpow.pop %v531
    %v533 = vadd.f32 %v532, 1.0
    %v534 = vrcp.pop %v533
    %v535 = vmul.f32 1.0, %v534
    %v536 = vtanh.pop %v529
    %538 = vrot.lane.b32.xlu0 %v471, 32
    %v539 = vpop.permute.xlu0 %538
    %v541 = vmul.f32 %v535, %v539
    %543 = vrot.lane.b32.xlu0 %v536, 64
    %v544 = vpop.permute.xlu0 %543
    %v546 = vmul.f32 %v535, %v544
    %548 = vrot.lane.b32.xlu0 %v546, 32
    %v549 = vpop.permute.xlu0 %548
    %v551 = vadd.f32 %v541, %v549
    %v552 = vtanh.pop %v551
    %554 = vrot.lane.b32.xlu0 %v552, 64
    %v555 = vpop.permute.xlu0 %554
    %v557 = vmul.f32 %v535, %v555
    %p558 = scmp.lt.s32.totalorder %s469, 8
    %s559 = scalar_select %p558, 1, 0
    %s560 = scvt.s32.f32 %s559
    %v561 = vstv %s560
    %v562 = vmul.f32 %v561, %v557
    %s563 = ssub.f32 1.0, %s560
    %v564 = vstv %s563
    %v565 = vmul.f32 %v564, %v470
    %567 = vrot.lane.b32.xlu0 %v565, 96
    %v568 = vpop.permute.xlu0 %567
    %v570 = vadd.f32 %v562, %v568
    %v571 = vmul.f32 %v561, %v551
    %v572 = vmul.f32 %v564, %v471
    %574 = vrot.lane.b32.xlu0 %v572, 32
    %v575 = vpop.permute.xlu0 %574
    %v577 = vadd.f32 %v571, %v575
    %v578 = vpack.c.bf16 %v570, %v570
    %580 = vrot.lane.b32.xlu0 %v578, 32
    %v581 = vpop.permute.xlu0 %580
    %v583 = vsel %vm95, %v581, 0
    %585 = vmatprep.subr.bf16.mxu0 0
    %586 = vmatpush1.bf16.msra.mxu0 %v481
    %587 = vmatprep.subr.bf16.mxu0 0
    %588 = vmatpush1.bf16.msra.mxu0 %v482
    %589 = vmatprep.subr.bf16.mxu0 0
    %590 = vmatpush1.bf16.msra.mxu0 0
    %591 = vmatprep.subr.bf16.mxu0 0
    %592 = vmatpush1.bf16.msra.mxu0 0
    %593 = vmatprep.subr.bf16.mxu0 0
    %594 = vmatpush1.bf16.msra.mxu0 0
    %595 = vmatprep.subr.bf16.mxu0 0
    %596 = vmatpush1.bf16.msra.mxu0 0
    %597 = vmatprep.subr.bf16.mxu0 0
    %598 = vmatpush1.bf16.msra.mxu0 0
    %599 = vmatprep.subr.bf16.mxu0 0
    %600 = vmatpush1.bf16.msra.mxu0 0
    %601 = vmatprep.subr.bf16.mxu0 0
    %602 = vmatpush1.bf16.msra.mxu0 0
    %603 = vmatprep.subr.bf16.mxu0 0
    %604 = vmatpush1.bf16.msra.mxu0 0
    %605 = vmatprep.subr.bf16.mxu0 0
    %606 = vmatpush1.bf16.msra.mxu0 0
    %607 = vmatprep.subr.bf16.mxu0 0
    %608 = vmatpush1.bf16.msra.mxu0 0
    %609 = vmatprep.subr.bf16.mxu0 0
    %610 = vmatpush1.bf16.msra.mxu0 0
    %611 = vmatprep.subr.bf16.mxu0 0
    %612 = vmatpush1.bf16.msra.mxu0 0
    %613 = vmatprep.subr.bf16.mxu0 0
    %614 = vmatpush1.bf16.msra.mxu0 0
    %615 = vmatprep.subr.bf16.mxu0 0
    %616 = vmatpush1.bf16.msra.mxu0 0
    %617 = vmatprep.mubr.bf16.mxu0 0
    %618 = vmatmul.mubr.bf16.gmra.mrb[0].mxu0 %v583
    %v619 = vpop.f32.mrb[0].mxu0
    %v620 = vadd.f32 0.0, %v619
    %v621 = vpop.f32.mrb[0].mxu0
    %v622 = vpop.f32.mrb[0].mxu0
    %v623 = vpop.f32.mrb[0].mxu0
    %624 = vdwg.mxu0
    %v625 = vld [vmem:[%s185] sm:$0x3]
    %v626 = vadd.f32 %v625, %v620
    %v627 = vxor.u32 %v626, 2147483648
    %v628 = vmul.f32 %v627, 1.442695
    %v629 = vpow.pop %v628
    %v630 = vadd.f32 %v629, 1.0
    %v631 = vrcp.pop %v630
    %v632 = vmul.f32 1.0, %v631
    %v633 = vtanh.pop %v626
    %v634 = vmul.f32 %v632, %v577
    %636 = vrot.lane.b32.xlu0 %v633, 64
    %v637 = vpop.permute.xlu0 %636
    %v639 = vmul.f32 %v632, %v637
    %641 = vrot.lane.b32.xlu0 %v639, 32
    %v642 = vpop.permute.xlu0 %641
    %v644 = vadd.f32 %v634, %v642
    %v645 = vtanh.pop %v644
    %647 = vrot.lane.b32.xlu0 %v645, 64
    %v648 = vpop.permute.xlu0 %647
    %v650 = vmul.f32 %v632, %v648
    %s651 = sadd.s32 %s469, 1
    %p652 = scmp.lt.s32.totalorder %s651, 8
    %s653 = scalar_select %p652, 1, 0
    %s654 = scvt.s32.f32 %s653
    %v655 = vstv %s654
    %v656 = vmul.f32 %v655, %v650
    %s657 = ssub.f32 1.0, %s654
    %v658 = vstv %s657
    %v659 = vmul.f32 %v658, %v570
    %v660 = vadd.f32 %v656, %v659
    %v661 = vmul.f32 %v655, %v644
    %v662 = vmul.f32 %v658, %v577
    %v663 = vadd.f32 %v661, %v662
    %v664 = vpack.c.bf16 %v660, %v660
    %666 = vrot.lane.b32.xlu0 %v664, 32
    %v667 = vpop.permute.xlu0 %666
    %v669 = vsel %vm95, %v667, 0
    %671 = vmatprep.subr.bf16.mxu0 0
    %672 = vmatpush1.bf16.msra.mxu0 %v481
    %673 = vmatprep.subr.bf16.mxu0 0
    %674 = vmatpush1.bf16.msra.mxu0 %v482
    %675 = vmatprep.subr.bf16.mxu0 0
    %676 = vmatpush1.bf16.msra.mxu0 0
    %677 = vmatprep.subr.bf16.mxu0 0
    %678 = vmatpush1.bf16.msra.mxu0 0
    %679 = vmatprep.subr.bf16.mxu0 0
    %680 = vmatpush1.bf16.msra.mxu0 0
    %681 = vmatprep.subr.bf16.mxu0 0
    %682 = vmatpush1.bf16.msra.mxu0 0
    %683 = vmatprep.subr.bf16.mxu0 0
    %684 = vmatpush1.bf16.msra.mxu0 0
    %685 = vmatprep.subr.bf16.mxu0 0
    %686 = vmatpush1.bf16.msra.mxu0 0
    %687 = vmatprep.subr.bf16.mxu0 0
    %688 = vmatpush1.bf16.msra.mxu0 0
    %689 = vmatprep.subr.bf16.mxu0 0
    %690 = vmatpush1.bf16.msra.mxu0 0
    %691 = vmatprep.subr.bf16.mxu0 0
    %692 = vmatpush1.bf16.msra.mxu0 0
    %693 = vmatprep.subr.bf16.mxu0 0
    %694 = vmatpush1.bf16.msra.mxu0 0
    %695 = vmatprep.subr.bf16.mxu0 0
    %696 = vmatpush1.bf16.msra.mxu0 0
    %697 = vmatprep.subr.bf16.mxu0 0
    %698 = vmatpush1.bf16.msra.mxu0 0
    %699 = vmatprep.subr.bf16.mxu0 0
    %700 = vmatpush1.bf16.msra.mxu0 0
    %701 = vmatprep.subr.bf16.mxu0 0
    %702 = vmatpush1.bf16.msra.mxu0 0
    %703 = vmatprep.mubr.bf16.mxu0 0
    %704 = vmatmul.mubr.bf16.gmra.mrb[0].mxu0 %v669
    %v705 = vpop.f32.mrb[0].mxu0
    %v706 = vadd.f32 0.0, %v705
    %v707 = vpop.f32.mrb[0].mxu0
    %v708 = vpop.f32.mrb[0].mxu0
    %v709 = vpop.f32.mrb[0].mxu0
    %710 = vdwg.mxu0
    %v711 = vld [vmem:[%s232] sm:$0x3]
    %v712 = vadd.f32 %v711, %v706
    %v713 = vxor.u32 %v712, 2147483648
    %v714 = vmul.f32 %v713, 1.442695
    %v715 = vpow.pop %v714
    %v716 = vadd.f32 %v715, 1.0
    %v717 = vrcp.pop %v716
    %v718 = vmul.f32 1.0, %v717
    %v719 = vtanh.pop %v712
    %v720 = vmul.f32 %v718, %v663
    %722 = vrot.lane.b32.xlu0 %v719, 64
    %v723 = vpop.permute.xlu0 %722
    %v725 = vmul.f32 %v718, %v723
    %727 = vrot.lane.b32.xlu0 %v725, 32
    %v728 = vpop.permute.xlu0 %727
    %v730 = vadd.f32 %v720, %v728
    %v731 = vtanh.pop %v730
    %733 = vrot.lane.b32.xlu0 %v731, 64
    %v734 = vpop.permute.xlu0 %733
    %v736 = vmul.f32 %v718, %v734
    %s737 = sadd.s32 %s469, 2
    %p738 = scmp.lt.s32.totalorder %s737, 8
    %s739 = scalar_select %p738, 1, 0
    %s740 = scvt.s32.f32 %s739
    %v741 = vstv %s740
    %v742 = vmul.f32 %v741, %v736
    %s743 = ssub.f32 1.0, %s740
    %v744 = vstv %s743
    %v745 = vmul.f32 %v744, %v660
    %v746 = vadd.f32 %v742, %v745
    %v747 = vmul.f32 %v741, %v730
    %v748 = vmul.f32 %v744, %v663
    %v749 = vadd.f32 %v747, %v748
    %v750 = vpack.c.bf16 %v746, %v746
    %752 = vrot.lane.b32.xlu0 %v750, 32
    %v753 = vpop.permute.xlu0 %752
    %v755 = vsel %vm95, %v753, 0
    %757 = vmatprep.subr.bf16.mxu0 0
    %758 = vmatpush1.bf16.msra.mxu0 %v481
    %759 = vmatprep.subr.bf16.mxu0 0
    %760 = vmatpush1.bf16.msra.mxu0 %v482
    %761 = vmatprep.subr.bf16.mxu0 0
    %762 = vmatpush1.bf16.msra.mxu0 0
    %763 = vmatprep.subr.bf16.mxu0 0
    %764 = vmatpush1.bf16.msra.mxu0 0
    %765 = vmatprep.subr.bf16.mxu0 0
    %766 = vmatpush1.bf16.msra.mxu0 0
    %767 = vmatprep.subr.bf16.mxu0 0
    %768 = vmatpush1.bf16.msra.mxu0 0
    %769 = vmatprep.subr.bf16.mxu0 0
    %770 = vmatpush1.bf16.msra.mxu0 0
    %771 = vmatprep.subr.bf16.mxu0 0
    %772 = vmatpush1.bf16.msra.mxu0 0
    %773 = vmatprep.subr.bf16.mxu0 0
    %774 = vmatpush1.bf16.msra.mxu0 0
    %775 = vmatprep.subr.bf16.mxu0 0
    %776 = vmatpush1.bf16.msra.mxu0 0
    %777 = vmatprep.subr.bf16.mxu0 0
    %778 = vmatpush1.bf16.msra.mxu0 0
    %779 = vmatprep.subr.bf16.mxu0 0
    %780 = vmatpush1.bf16.msra.mxu0 0
    %781 = vmatprep.subr.bf16.mxu0 0
    %782 = vmatpush1.bf16.msra.mxu0 0
    %783 = vmatprep.subr.bf16.mxu0 0
    %784 = vmatpush1.bf16.msra.mxu0 0
    %785 = vmatprep.subr.bf16.mxu0 0
    %786 = vmatpush1.bf16.msra.mxu0 0
    %787 = vmatprep.subr.bf16.mxu0 0
    %788 = vmatpush1.bf16.msra.mxu0 0
    %789 = vmatprep.mubr.bf16.mxu0 0
    %790 = vmatmul.mubr.bf16.gmra.mrb[0].mxu0 %v755
    %v791 = vpop.f32.mrb[0].mxu0
    %v792 = vadd.f32 0.0, %v791
    %v793 = vpop.f32.mrb[0].mxu0
    %v794 = vpop.f32.mrb[0].mxu0
    %v795 = vpop.f32.mrb[0].mxu0
    %796 = vdwg.mxu0
    %v797 = vld [vmem:[%s279] sm:$0x3]
    %v798 = vadd.f32 %v797, %v792
    %v799 = vxor.u32 %v798, 2147483648
    %v800 = vmul.f32 %v799, 1.442695
    %v801 = vpow.pop %v800
    %v802 = vadd.f32 %v801, 1.0
    %v803 = vrcp.pop %v802
    %v804 = vmul.f32 1.0, %v803
    %v805 = vtanh.pop %v798
    %v806 = vmul.f32 %v804, %v749
    %808 = vrot.lane.b32.xlu0 %v805, 64
    %v809 = vpop.permute.xlu0 %808
    %v811 = vmul.f32 %v804, %v809
    %813 = vrot.lane.b32.xlu0 %v811, 32
    %v814 = vpop.permute.xlu0 %813
    %v816 = vadd.f32 %v806, %v814
    %v817 = vtanh.pop %v816
    %819 = vrot.lane.b32.xlu0 %v817, 64
    %v820 = vpop.permute.xlu0 %819
    %v822 = vmul.f32 %v804, %v820
    %s823 = sadd.s32 %s469, 3
    %p824 = scmp.lt.s32.totalorder %s823, 8
    %s825 = scalar_select %p824, 1, 0
    %s826 = scvt.s32.f32 %s825
    %v827 = vstv %s826
    %v828 = vmul.f32 %v827, %v822
    %s829 = ssub.f32 1.0, %s826
    %v830 = vstv %s829
    %v831 = vmul.f32 %v830, %v746
    %v832 = vadd.f32 %v828, %v831
    %v833 = vmul.f32 %v827, %v816
    %v834 = vmul.f32 %v830, %v749
    %v835 = vadd.f32 %v833, %v834
    %v836 = vpack.c.bf16 %v832, %v832
    %838 = vrot.lane.b32.xlu0 %v836, 32
    %v839 = vpop.permute.xlu0 %838
    %v841 = vsel %vm95, %v839, 0
    %843 = vmatprep.subr.bf16.mxu0 0
    %844 = vmatpush1.bf16.msra.mxu0 %v481
    %845 = vmatprep.subr.bf16.mxu0 0
    %846 = vmatpush1.bf16.msra.mxu0 %v482
    %847 = vmatprep.subr.bf16.mxu0 0
    %848 = vmatpush1.bf16.msra.mxu0 0
    %849 = vmatprep.subr.bf16.mxu0 0
    %850 = vmatpush1.bf16.msra.mxu0 0
    %851 = vmatprep.subr.bf16.mxu0 0
    %852 = vmatpush1.bf16.msra.mxu0 0
    %853 = vmatprep.subr.bf16.mxu0 0
    %854 = vmatpush1.bf16.msra.mxu0 0
    %855 = vmatprep.subr.bf16.mxu0 0
    %856 = vmatpush1.bf16.msra.mxu0 0
    %857 = vmatprep.subr.bf16.mxu0 0
    %858 = vmatpush1.bf16.msra.mxu0 0
    %859 = vmatprep.subr.bf16.mxu0 0
    %860 = vmatpush1.bf16.msra.mxu0 0
    %861 = vmatprep.subr.bf16.mxu0 0
    %862 = vmatpush1.bf16.msra.mxu0 0
    %863 = vmatprep.subr.bf16.mxu0 0
    %864 = vmatpush1.bf16.msra.mxu0 0
    %865 = vmatprep.subr.bf16.mxu0 0
    %866 = vmatpush1.bf16.msra.mxu0 0
    %867 = vmatprep.subr.bf16.mxu0 0
    %868 = vmatpush1.bf16.msra.mxu0 0
    %869 = vmatprep.subr.bf16.mxu0 0
    %870 = vmatpush1.bf16.msra.mxu0 0
    %871 = vmatprep.subr.bf16.mxu0 0
    %872 = vmatpush1.bf16.msra.mxu0 0
    %873 = vmatprep.subr.bf16.mxu0 0
    %874 = vmatpush1.bf16.msra.mxu0 0
    %875 = vmatprep.mubr.bf16.mxu0 0
    %876 = vmatmul.mubr.bf16.gmra.mrb[0].mxu0 %v841
    %v877 = vpop.f32.mrb[0].mxu0
    %v878 = vadd.f32 0.0, %v877
    %v879 = vpop.f32.mrb[0].mxu0
    %v880 = vpop.f32.mrb[0].mxu0
    %v881 = vpop.f32.mrb[0].mxu0
    %882 = vdwg.mxu0
    %v883 = vld [vmem:[%s326] sm:$0x3]
    %v884 = vadd.f32 %v883, %v878
    %v885 = vxor.u32 %v884, 2147483648
    %v886 = vmul.f32 %v885, 1.442695
    %v887 = vpow.pop %v886
    %v888 = vadd.f32 %v887, 1.0
    %v889 = vrcp.pop %v888
    %v890 = vmul.f32 1.0, %v889
    %v891 = vtanh.pop %v884
    %v892 = vmul.f32 %v890, %v835
    %894 = vrot.lane.b32.xlu0 %v891, 64
    %v895 = vpop.permute.xlu0 %894
    %v897 = vmul.f32 %v890, %v895
    %899 = vrot.lane.b32.xlu0 %v897, 32
    %v900 = vpop.permute.xlu0 %899
    %v902 = vadd.f32 %v892, %v900
    %v903 = vtanh.pop %v902
    %905 = vrot.lane.b32.xlu0 %v903, 64
    %v906 = vpop.permute.xlu0 %905
    %v908 = vmul.f32 %v890, %v906
    %s909 = sadd.s32 %s469, 4
    %p910 = scmp.lt.s32.totalorder %s909, 8
    %s911 = scalar_select %p910, 1, 0
    %s912 = scvt.s32.f32 %s911
    %v913 = vstv %s912
    %v914 = vmul.f32 %v913, %v908
    %s915 = ssub.f32 1.0, %s912
    %v916 = vstv %s915
    %v917 = vmul.f32 %v916, %v832
    %v918 = vadd.f32 %v914, %v917
    %v919 = vmul.f32 %v913, %v902
    %v920 = vmul.f32 %v916, %v835
    %v921 = vadd.f32 %v919, %v920
    %v922 = vpack.c.bf16 %v918, %v918
    %924 = vrot.lane.b32.xlu0 %v922, 32
    %v925 = vpop.permute.xlu0 %924
    %v927 = vsel %vm95, %v925, 0
    %929 = vmatprep.subr.bf16.mxu0 0
    %930 = vmatpush1.bf16.msra.mxu0 %v481
    %931 = vmatprep.subr.bf16.mxu0 0
    %932 = vmatpush1.bf16.msra.mxu0 %v482
    %933 = vmatprep.subr.bf16.mxu0 0
    %934 = vmatpush1.bf16.msra.mxu0 0
    %935 = vmatprep.subr.bf16.mxu0 0
    %936 = vmatpush1.bf16.msra.mxu0 0
    %937 = vmatprep.subr.bf16.mxu0 0
    %938 = vmatpush1.bf16.msra.mxu0 0
    %939 = vmatprep.subr.bf16.mxu0 0
    %940 = vmatpush1.bf16.msra.mxu0 0
    %941 = vmatprep.subr.bf16.mxu0 0
    %942 = vmatpush1.bf16.msra.mxu0 0
    %943 = vmatprep.subr.bf16.mxu0 0
    %944 = vmatpush1.bf16.msra.mxu0 0
    %945 = vmatprep.subr.bf16.mxu0 0
    %946 = vmatpush1.bf16.msra.mxu0 0
    %947 = vmatprep.subr.bf16.mxu0 0
    %948 = vmatpush1.bf16.msra.mxu0 0
    %949 = vmatprep.subr.bf16.mxu0 0
    %950 = vmatpush1.bf16.msra.mxu0 0
    %951 = vmatprep.subr.bf16.mxu0 0
    %952 = vmatpush1.bf16.msra.mxu0 0
    %953 = vmatprep.subr.bf16.mxu0 0
    %954 = vmatpush1.bf16.msra.mxu0 0
    %955 = vmatprep.subr.bf16.mxu0 0
    %956 = vmatpush1.bf16.msra.mxu0 0
    %957 = vmatprep.subr.bf16.mxu0 0
    %958 = vmatpush1.bf16.msra.mxu0 0
    %959 = vmatprep.subr.bf16.mxu0 0
    %960 = vmatpush1.bf16.msra.mxu0 0
    %961 = vmatprep.mubr.bf16.mxu0 0
    %962 = vmatmul.mubr.bf16.gmra.mrb[0].mxu0 %v927
    %v963 = vpop.f32.mrb[0].mxu0
    %v964 = vadd.f32 0.0, %v963
    %v965 = vpop.f32.mrb[0].mxu0
    %v966 = vpop.f32.mrb[0].mxu0
    %v967 = vpop.f32.mrb[0].mxu0
    %968 = vdwg.mxu0
    %v969 = vld [vmem:[%s373] sm:$0x3]
    %v970 = vadd.f32 %v969, %v964
    %v971 = vxor.u32 %v970, 2147483648
    %v972 = vmul.f32 %v971, 1.442695
    %v973 = vpow.pop %v972
    %v974 = vadd.f32 %v973, 1.0
    %v975 = vrcp.pop %v974
    %v976 = vmul.f32 1.0, %v975
    %v977 = vtanh.pop %v970
    %v978 = vmul.f32 %v976, %v921
    %980 = vrot.lane.b32.xlu0 %v977, 64
    %v981 = vpop.permute.xlu0 %980
    %v983 = vmul.f32 %v976, %v981
    %985 = vrot.lane.b32.xlu0 %v983, 32
    %v986 = vpop.permute.xlu0 %985
    %v988 = vadd.f32 %v978, %v986
    %v989 = vtanh.pop %v988
    %991 = vrot.lane.b32.xlu0 %v989, 64
    %v992 = vpop.permute.xlu0 %991
    %v994 = vmul.f32 %v976, %v992
    %s995 = sadd.s32 %s469, 5
    %p996 = scmp.lt.s32.totalorder %s995, 8
    %s997 = scalar_select %p996, 1, 0
    %s998 = scvt.s32.f32 %s997
    %v999 = vstv %s998
    %v1000 = vmul.f32 %v999, %v994
    %s1001 = ssub.f32 1.0, %s998
    %v1002 = vstv %s1001
    %v1003 = vmul.f32 %v1002, %v918
    %v1004 = vadd.f32 %v1000, %v1003
    %v1005 = vmul.f32 %v999, %v988
    %v1006 = vmul.f32 %v1002, %v921
    %v1007 = vadd.f32 %v1005, %v1006
    %v1008 = vpack.c.bf16 %v1004, %v1004
    %1010 = vrot.lane.b32.xlu0 %v1008, 32
    %v1011 = vpop.permute.xlu0 %1010
    %v1013 = vsel %vm95, %v1011, 0
    %1015 = vmatprep.subr.bf16.mxu0 0
    %1016 = vmatpush1.bf16.msra.mxu0 %v481
    %1017 = vmatprep.subr.bf16.mxu0 0
    %1018 = vmatpush1.bf16.msra.mxu0 %v482
    %1019 = vmatprep.subr.bf16.mxu0 0
    %1020 = vmatpush1.bf16.msra.mxu0 0
    %1021 = vmatprep.subr.bf16.mxu0 0
    %1022 = vmatpush1.bf16.msra.mxu0 0
    %1023 = vmatprep.subr.bf16.mxu0 0
    %1024 = vmatpush1.bf16.msra.mxu0 0
    %1025 = vmatprep.subr.bf16.mxu0 0
    %1026 = vmatpush1.bf16.msra.mxu0 0
    %1027 = vmatprep.subr.bf16.mxu0 0
    %1028 = vmatpush1.bf16.msra.mxu0 0
    %1029 = vmatprep.subr.bf16.mxu0 0
    %1030 = vmatpush1.bf16.msra.mxu0 0
    %1031 = vmatprep.subr.bf16.mxu0 0
    %1032 = vmatpush1.bf16.msra.mxu0 0
    %1033 = vmatprep.subr.bf16.mxu0 0
    %1034 = vmatpush1.bf16.msra.mxu0 0
    %1035 = vmatprep.subr.bf16.mxu0 0
    %1036 = vmatpush1.bf16.msra.mxu0 0
    %1037 = vmatprep.subr.bf16.mxu0 0
    %1038 = vmatpush1.bf16.msra.mxu0 0
    %1039 = vmatprep.subr.bf16.mxu0 0
    %1040 = vmatpush1.bf16.msra.mxu0 0
    %1041 = vmatprep.subr.bf16.mxu0 0
    %1042 = vmatpush1.bf16.msra.mxu0 0
    %1043 = vmatprep.subr.bf16.mxu0 0
    %1044 = vmatpush1.bf16.msra.mxu0 0
    %1045 = vmatprep.subr.bf16.mxu0 0
    %1046 = vmatpush1.bf16.msra.mxu0 0
    %1047 = vmatprep.mubr.bf16.mxu0 0
    %1048 = vmatmul.mubr.bf16.gmra.mrb[0].mxu0 %v1013
    %v1049 = vpop.f32.mrb[0].mxu0
    %v1050 = vadd.f32 0.0, %v1049
    %v1051 = vpop.f32.mrb[0].mxu0
    %v1052 = vpop.f32.mrb[0].mxu0
    %v1053 = vpop.f32.mrb[0].mxu0
    %1054 = vdwg.mxu0
    %v1055 = vld [vmem:[%s420] sm:$0x3]
    %v1056 = vadd.f32 %v1055, %v1050
    %v1057 = vxor.u32 %v1056, 2147483648
    %v1058 = vmul.f32 %v1057, 1.442695
    %v1059 = vpow.pop %v1058
    %v1060 = vadd.f32 %v1059, 1.0
    %v1061 = vrcp.pop %v1060
    %v1062 = vmul.f32 1.0, %v1061
    %v1063 = vtanh.pop %v1056
    %v1064 = vmul.f32 %v1062, %v1007
    %1066 = vrot.lane.b32.xlu0 %v1063, 64
    %v1067 = vpop.permute.xlu0 %1066
    %v1069 = vmul.f32 %v1062, %v1067
    %1071 = vrot.lane.b32.xlu0 %v1069, 32
    %v1072 = vpop.permute.xlu0 %1071
    %v1074 = vadd.f32 %v1064, %v1072
    %v1075 = vtanh.pop %v1074
    %1077 = vrot.lane.b32.xlu0 %v1075, 64
    %v1078 = vpop.permute.xlu0 %1077
    %v1080 = vmul.f32 %v1062, %v1078
    %s1081 = sadd.s32 %s469, 6
    %p1082 = scmp.lt.s32.totalorder %s1081, 8
    %s1083 = scalar_select %p1082, 1, 0
    %s1084 = scvt.s32.f32 %s1083
    %v1085 = vstv %s1084
    %v1086 = vmul.f32 %v1085, %v1080
    %s1087 = ssub.f32 1.0, %s1084
    %v1088 = vstv %s1087
    %v1089 = vmul.f32 %v1088, %v1004
    %v1090 = vadd.f32 %v1086, %v1089
    %v1091 = vmul.f32 %v1085, %v1074
    %v1092 = vmul.f32 %v1088, %v1007
    %v1093 = vadd.f32 %v1091, %v1092
    %v1094 = vpack.c.bf16 %v1090, %v1090
    %1096 = vrot.lane.b32.xlu0 %v1094, 32
    %v1097 = vpop.permute.xlu0 %1096
    %v1099 = vsel %vm95, %v1097, 0
    %1101 = vmatprep.subr.bf16.mxu0 0
    %1102 = vmatpush1.bf16.msra.mxu0 %v481
    %1103 = vmatprep.subr.bf16.mxu0 0
    %1104 = vmatpush1.bf16.msra.mxu0 %v482
    %1105 = vmatprep.subr.bf16.mxu0 0
    %1106 = vmatpush1.bf16.msra.mxu0 0
    %1107 = vmatprep.subr.bf16.mxu0 0
    %1108 = vmatpush1.bf16.msra.mxu0 0
    %1109 = vmatprep.subr.bf16.mxu0 0
    %1110 = vmatpush1.bf16.msra.mxu0 0
    %1111 = vmatprep.subr.bf16.mxu0 0
    %1112 = vmatpush1.bf16.msra.mxu0 0
    %1113 = vmatprep.subr.bf16.mxu0 0
    %1114 = vmatpush1.bf16.msra.mxu0 0
    %1115 = vmatprep.subr.bf16.mxu0 0
    %1116 = vmatpush1.bf16.msra.mxu0 0
    %1117 = vmatprep.subr.bf16.mxu0 0
    %1118 = vmatpush1.bf16.msra.mxu0 0
    %1119 = vmatprep.subr.bf16.mxu0 0
    %1120 = vmatpush1.bf16.msra.mxu0 0
    %1121 = vmatprep.subr.bf16.mxu0 0
    %1122 = vmatpush1.bf16.msra.mxu0 0
    %1123 = vmatprep.subr.bf16.mxu0 0
    %1124 = vmatpush1.bf16.msra.mxu0 0
    %1125 = vmatprep.subr.bf16.mxu0 0
    %1126 = vmatpush1.bf16.msra.mxu0 0
    %1127 = vmatprep.subr.bf16.mxu0 0
    %1128 = vmatpush1.bf16.msra.mxu0 0
    %1129 = vmatprep.subr.bf16.mxu0 0
    %1130 = vmatpush1.bf16.msra.mxu0 0
    %1131 = vmatprep.subr.bf16.mxu0 0
    %1132 = vmatpush1.bf16.msra.mxu0 0
    %1133 = vmatprep.mubr.bf16.mxu0 0
    %1134 = vmatmul.mubr.bf16.gmra.mrb[0].mxu0 %v1099
    %v1135 = vpop.f32.mrb[0].mxu0
    %v1136 = vadd.f32 0.0, %v1135
    %v1137 = vpop.f32.mrb[0].mxu0
    %v1138 = vpop.f32.mrb[0].mxu0
    %v1139 = vpop.f32.mrb[0].mxu0
    %1140 = vdwg.mxu0
    %v1141 = vld [vmem:[%s467] sm:$0x3]
    %v1142 = vadd.f32 %v1141, %v1136
    %v1143 = vxor.u32 %v1142, 2147483648
    %v1144 = vmul.f32 %v1143, 1.442695
    %v1145 = vpow.pop %v1144
    %v1146 = vadd.f32 %v1145, 1.0
    %v1147 = vrcp.pop %v1146
    %v1148 = vmul.f32 1.0, %v1147
    %v1149 = vtanh.pop %v1142
    %v1150 = vmul.f32 %v1148, %v1093
    %1152 = vrot.lane.b32.xlu0 %v1149, 64
    %v1153 = vpop.permute.xlu0 %1152
    %v1155 = vmul.f32 %v1148, %v1153
    %1157 = vrot.lane.b32.xlu0 %v1155, 32
    %v1158 = vpop.permute.xlu0 %1157
    %v1160 = vadd.f32 %v1150, %v1158
    %v1161 = vtanh.pop %v1160
    %1163 = vrot.lane.b32.xlu0 %v1161, 64
    %v1164 = vpop.permute.xlu0 %1163
    %v1166 = vmul.f32 %v1148, %v1164
    %s1167 = sadd.s32 %s469, 7
    %p1168 = scmp.lt.s32.totalorder %s1167, 8
    %s1169 = scalar_select %p1168, 1, 0
    %s1170 = scvt.s32.f32 %s1169
    %v1171 = vstv %s1170
    %v1172 = vmul.f32 %v1171, %v1166
    %s1173 = ssub.f32 1.0, %s1170
    %v1174 = vstv %s1173
    %v1175 = vmul.f32 %v1174, %v1090
    %v1176 = vadd.f32 %v1172, %v1175
    %v1177 = vmul.f32 %v1171, %v1160
    %v1178 = vmul.f32 %v1174, %v1093
    %v1179 = vadd.f32 %v1177, %v1178
    %1181 = vrot.lane.b32.xlu0 %v1176, 32
    %v1182 = vpop.permute.xlu0 %1181
    %vm1184 = vcmask 254976
    %1185 = vst.msk [vmem:[#allocation3] sm:$0x3] %vm1184, %v1182
    %1187 = vrot.lane.b32.xlu0 %v1179, 96
    %v1188 = vpop.permute.xlu0 %1187
    %1190 = vst.msk [vmem:[#allocation4] sm:$0x3] %vm1184, %v1188
    // Predicated region
    $region34: #{tpu_custom_call.1} parent=1 // pred_check
      %p1191 = pneg %p60
    $region35: #{tpu_custom_call.1} parent=1 // pred_check_branch
      %1193 = sbr.rel (%p1191) target = $region37
    $region36: #{tpu_custom_call.1} parent=1 // pred_region
      %1194 = vst.msk [vmem:[#allocation11] sm:$0x3] %vm1184, %v1182
    $region37: #{tpu_custom_call.1} parent=1 // pred_fallthru
      _
    // Predicated region
    $region38: #{tpu_custom_call.1} parent=1 // pred_check
      _
    $region39: #{tpu_custom_call.1} parent=1 // pred_check_branch
      %1196 = sbr.rel (0) target = $region41
    $region40: #{tpu_custom_call.1} parent=1 // pred_region
      %s1198 = ssub.s32 32, 32
      %1199 = vsyncadd [#allocation7], %s1198
      %s1201 = sshll.u32 [#allocation11], 4
      %s1202 = int_to_ptr.vmem [resolvable:$true] %s1201
      %1204 = dma.vmem_to_hbm [thread:$0]  %s1202, 32, %s4, [#allocation7]
    $region41: #{tpu_custom_call.1} parent=1 // pred_fallthru
      _
    // Predicated region
    $region42: #{tpu_custom_call.1} parent=1 // pred_check
      _
    $region43: #{tpu_custom_call.1} parent=1 // pred_check_branch
      %1206 = sbr.rel (0) target = $region45
    $region44: #{tpu_custom_call.1} parent=1 // pred_region
      %1207 = dma.done [#allocation7], 32
    $region45: #{tpu_custom_call.1} parent=1 // pred_fallthru
      _
    %1208 = vsyncpa [#allocation6], 1
    %1209 = vsyncpa [#allocation9], 1
    %1210 = vsyncpa [#allocation7], 1

</llo_original>
